<compile_context>
chip_gen: v6e
topology: v6e:2x2x1
jax: 0.10.0
libtpu: 0.0.40
codegen_flags: <defaults>
</compile_context>

<pallas_src>
import jax
import jax.numpy as jnp
from jax.experimental import pallas as pl
from jax.experimental.pallas import tpu as pltpu


# ------------------------------ tiling helpers ------------------------------

def _pick_tile(dim, preferred, align):
    """Largest tile <= preferred that divides `dim` and is a multiple of
    `align`; falls back to the full dim (always a legal block size)."""
    t = (min(preferred, dim) // align) * align
    while t >= align:
        if dim % t == 0:
            return t
        t -= align
    return dim


def _largest_divisor_at_most(n, cap):
    for t in range(min(cap, n), 0, -1):
        if n % t == 0:
            return t
    return 1


def _matmul_tiles(M, N, K, budget_bytes=20 << 20):
    """Pick (tm, tn) so double-buffered f32 blocks x(tm,K), w(K,tn), out(tm,tn)
    stay within a conservative VMEM budget (v7x has only 64 MiB physical)."""
    tm_pref, tn_pref = 512, 1024
    while True:
        tm = _pick_tile(M, tm_pref, 8)
        tn = _pick_tile(N, tn_pref, 128)
        need = 2 * 4 * (tm * K + K * tn + tm * tn)
        if need <= budget_bytes or (tm_pref <= 8 and tn_pref <= 128):
            return tm, tn
        if tn_pref > 128:
            tn_pref //= 2
        else:
            tm_pref //= 2


# --------------------- batched matmul kernels (stages 1 & 3) ----------------

def _matmul_bias_kernel(x_ref, w_ref, b_ref, o_ref):
    o_ref[...] = (jnp.dot(x_ref[...], w_ref[...],
                          preferred_element_type=jnp.float32) + b_ref[...])


def _matmul_kernel(x_ref, w_ref, o_ref):
    o_ref[...] = jnp.dot(x_ref[...], w_ref[...],
                         preferred_element_type=jnp.float32)


def _batched_matmul(x, w, bias=None):
    """out = x @ w (+ bias).  x:(M,K) f32, w:(K,N) f32, bias:(1,N) f32 or None."""
    M, K = x.shape
    _, N = w.shape
    tm, tn = _matmul_tiles(M, N, K)
    grid = (M // tm, N // tn)

    in_specs = [
        pl.BlockSpec((tm, K), lambda i, j: (i, 0)),
        pl.BlockSpec((K, tn), lambda i, j: (0, j)),
    ]
    args = [x, w]
    kernel = _matmul_kernel
    if bias is not None:
        in_specs.append(pl.BlockSpec((1, tn), lambda i, j: (0, j)))
        args.append(bias)
        kernel = _matmul_bias_kernel

    return pl.pallas_call(
        kernel,
        out_shape=jax.ShapeDtypeStruct((M, N), jnp.float32),
        grid_spec=pltpu.PrefetchScalarGridSpec(
            num_scalar_prefetch=0,
            grid=grid,
            in_specs=in_specs,
            out_specs=pl.BlockSpec((tm, tn), lambda i, j: (i, j)),
        ),
        compiler_params=pltpu.CompilerParams(
            dimension_semantics=("parallel", "parallel")),  # v7x: both TCs share this
    )(*args)


# --------------------- LSTM recurrence kernel (stage 2) ---------------------

def _lstm_recurrence_kernel(gx_ref, whh_ref, h0_ref, c0_ref,
                            h_out_ref, h_final_ref, c_final_ref, h_sc, c_sc):
    """One grid step == T timesteps of the recurrence.

    gx_ref      : (T, B, 4*nhid)  precomputed x@W_ih^T + bias for this block
    whh_ref     : (nhid, 4*nhid)  W_hh^T (resident across grid steps)
    h0/c0_ref   : (B, nhid)       initial states
    h_out_ref   : (T, B, nhid)    hidden sequence for this block (lane-dense)
    h_final_ref : (B, nhid)       final hidden state (written on last grid step)
    c_final_ref : (B, nhid)       final cell state   (written on last grid step)
    h_sc/c_sc   : (B, nhid) VMEM  recurrent state carried across grid steps
    """
    blk = pl.program_id(0)
    nhid = h_sc.shape[-1]
    T = gx_ref.shape[0]

    @pl.when(blk == 0)
    def _():
        h_sc[...] = h0_ref[...]
        c_sc[...] = c0_ref[...]

    whh = whh_ref[...]   # hoisted: single load of the recurrent weight

    def step(t, carry):
        h, c = carry
        gates = gx_ref[t] + jnp.dot(h, whh, preferred_element_type=jnp.float32)
        i_g = jax.nn.sigmoid(gates[:, 0 * nhid:1 * nhid])
        f_g = jax.nn.sigmoid(gates[:, 1 * nhid:2 * nhid])
        g_g = jnp.tanh(gates[:, 2 * nhid:3 * nhid])
        o_g = jax.nn.sigmoid(gates[:, 3 * nhid:4 * nhid])
        c_new = f_g * c + i_g * g_g
        h_new = o_g * jnp.tanh(c_new)
        h_out_ref[t] = h_new
        return (h_new, c_new)

    h, c = jax.lax.fori_loop(0, T, step, (h_sc[...], c_sc[...]), unroll=True)
    h_sc[...] = h
    c_sc[...] = c

    @pl.when(blk == pl.num_programs(0) - 1)
    def _():
        h_final_ref[...] = h
        c_final_ref[...] = c


def _lstm_recurrence(gates_x, whh_t, h0, c0):
    S, B, G = gates_x.shape
    nhid = whh_t.shape[0]
    T = _largest_divisor_at_most(S, 32)   # timesteps per grid step (amortize ~0.35us/step)

    grid_spec = pltpu.PrefetchScalarGridSpec(
        num_scalar_prefetch=0,
        grid=(S // T,),
        in_specs=[
            pl.BlockSpec((T, B, G), lambda b: (b, 0, 0)),     # gates_x block
            pl.BlockSpec((nhid, G), lambda b: (0, 0)),        # W_hh^T (resident)
            pl.BlockSpec((B, nhid), lambda b: (0, 0)),        # h0
            pl.BlockSpec((B, nhid), lambda b: (0, 0)),        # c0
        ],
        out_specs=[
            pl.BlockSpec((T, B, nhid), lambda b: (b, 0, 0)),  # h sequence
            pl.BlockSpec((B, nhid), lambda b: (0, 0)),        # final h
            pl.BlockSpec((B, nhid), lambda b: (0, 0)),        # final c
        ],
        scratch_shapes=[
            pltpu.VMEM((B, nhid), jnp.float32),               # h state
            pltpu.VMEM((B, nhid), jnp.float32),               # c state
        ],
    )

    h_seq, h_final, c_final = pl.pallas_call(
        _lstm_recurrence_kernel,
        out_shape=(
            jax.ShapeDtypeStruct((S, B, nhid), jnp.float32),
            jax.ShapeDtypeStruct((B, nhid), jnp.float32),
            jax.ShapeDtypeStruct((B, nhid), jnp.float32),
        ),
        grid_spec=grid_spec,
        compiler_params=pltpu.CompilerParams(
            dimension_semantics=("arbitrary",)),              # sequential recurrence
    )(gates_x, whh_t, h0, c0)
    return h_seq, h_final, c_final


# ------------------------------- full forward --------------------------------

@jax.jit
def lstm_model_forward(tokens, h0, c0, enc_w, w_ih, w_hh, b_ih, b_hh):
    """Forward pass matching LSTMModel.forward (dropout in eval mode == identity).

    tokens : (S, B) int32
    h0, c0 : (1, B, nhid) float32   (as produced by init_hidden)
    enc_w  : (ntokens, ninp)
    w_ih   : (4*nhid, ninp), w_hh : (4*nhid, nhid), b_ih/b_hh : (4*nhid,)
    Returns (logits (S, B, ntokens), (hN (1, B, nhid), cN (1, B, nhid)))
    """
    S, B = tokens.shape
    ntokens, ninp = enc_w.shape
    nhid = w_hh.shape[1]
    # Tied-weight projection reuses enc_w^T as (nhid, ntokens): requires ninp == nhid.
    assert ninp == nhid, "weight tying requires ninp == nhid"

    # Glue: embedding gather (table lookup) + eval-mode dropout (identity).
    # TODO(synk): training-mode dropout not implemented (forward here is eval/inference).
    # TODO(synk): embedding gather stays as jnp.take (one extra HBM round trip);
    #             a DMA-gather with scalar-prefetched tokens would fuse it.
    emb = jnp.take(enc_w, tokens, axis=0)            # (S, B, ninp)

    wih_t = w_ih.T                                   # (ninp, 4*nhid)
    whh_t = w_hh.T                                   # (nhid, 4*nhid)
    bias = (b_ih + b_hh)[None, :]                    # (1, 4*nhid)
    wenc_t = enc_w.T                                 # (nhid, ntokens)

    # Stage 1: input-side gate matmul for ALL timesteps at once (off the serial path).
    gates_x = _batched_matmul(emb.reshape(S * B, ninp), wih_t, bias)
    gates_x = gates_x.reshape(S, B, 4 * nhid)

    # Stage 2: serial recurrence, T timesteps per grid step.
    h_seq, h_final, c_final = _lstm_recurrence(gates_x, whh_t, h0[0], c0[0])

    # Stage 3: tied-weight projection as one big batched matmul.
    logits = _batched_matmul(h_seq.reshape(S * B, nhid), wenc_t)
    logits = logits.reshape(S, B, ntokens)

    return logits, (h_final[None, ...], c_final[None, ...])


# ------------------------------- pure-JAX reference --------------------------

def _reference_forward(tokens, h0, c0, enc_w, w_ih, w_hh, b_ih, b_hh):
    """Pure-JAX reference (lax.scan) replicating PyTorch nn.LSTM semantics."""
    emb = jnp.take(enc_w, tokens, axis=0)
    nhid = w_hh.shape[1]

    def step(carry, x_t):
        h, c = carry
        gates = x_t @ w_ih.T + b_ih + h @ w_hh.T + b_hh
        i = jax.nn.sigmoid(gates[:, 0 * nhid:1 * nhid])
        f = jax.nn.sigmoid(gates[:, 1 * nhid:2 * nhid])
        g = jnp.tanh(gates[:, 2 * nhid:3 * nhid])
        o = jax.nn.sigmoid(gates[:, 3 * nhid:4 * nhid])
        c_new = f * c + i * g
        h_new = o * jnp.tanh(c_new)
        return (h_new, c_new), h_new

    (hN, cN), outs = jax.lax.scan(step, (h0[0], c0[0]), emb)
    logits = outs @ enc_w.T
    return logits, (hN[None, ...], cN[None, ...])


if __name__ == "__main__":
    # Small shapes; ninp == nhid is required by the tied-weight projection.
    ntokens, ninp, nhid = 256, 128, 128
    seq_len, batch = 8, 8

    key = jax.random.PRNGKey(0)
    k_tok, k_enc, k_wih, k_whh, k_bih, k_bhh = jax.random.split(key, 6)

    tokens = jax.random.randint(k_tok, (seq_len, batch), 0, ntokens, dtype=jnp.int32)

    # Deterministic init matching the module's init conventions.
    enc_w = jax.random.uniform(k_enc, (ntokens, ninp), jnp.float32, -0.1, 0.1)
    stdv = 1.0 / (nhid ** 0.5)
    w_ih = jax.random.uniform(k_wih, (4 * nhid, ninp), jnp.float32, -stdv, stdv)
    w_hh = jax.random.uniform(k_whh, (4 * nhid, nhid), jnp.float32, -stdv, stdv)
    b_ih = jax.random.uniform(k_bih, (4 * nhid,), jnp.float32, -stdv, stdv)
    b_hh = jax.random.uniform(k_bhh, (4 * nhid,), jnp.float32, -stdv, stdv)

    # init_hidden(batch)
    h0 = jnp.zeros((1, batch, nhid), jnp.float32)
    c0 = jnp.zeros((1, batch, nhid), jnp.float32)

    logits, (hN, cN) = lstm_model_forward(tokens, h0, c0, enc_w, w_ih, w_hh, b_ih, b_hh)
    jax.block_until_ready((logits, hN, cN))

    ref_logits, (ref_hN, ref_cN) = _reference_forward(
        tokens, h0, c0, enc_w, w_ih, w_hh, b_ih, b_hh)

    assert logits.shape == (seq_len, batch, ntokens)
    assert hN.shape == (1, batch, nhid) and cN.shape == (1, batch, nhid)
    assert jnp.allclose(logits, ref_logits, atol=1e-4, rtol=1e-4)
    assert jnp.allclose(hN, ref_hN, atol=1e-5, rtol=1e-5)
    assert jnp.allclose(cN, ref_cN, atol=1e-5, rtol=1e-5)

    print("KERNEL_OK")
</pallas_src>

<mosaic_0001>
module attributes {stable_mosaic.version = 11 : i64} {
  func.func @_matmul_kernel(%arg0: i32, %arg1: i32, %arg2: memref<64x128xf32, #tpu.memory_space<vmem>>, %arg3: memref<128x256xf32, #tpu.memory_space<vmem>>, %arg4: memref<64x256xf32, #tpu.memory_space<vmem>>) attributes {dimension_semantics = [#tpu.dimension_semantics<parallel>, #tpu.dimension_semantics<parallel>], iteration_bounds = array<i64: 1, 1>, scalar_prefetch = 0 : i64, scratch_operands = 0 : i64, tpu.core_type = #tpu.core_type<tc>, window_params = [{transform_indices = @transform_0, window_bounds = array<i64: 64, 128>}, {transform_indices = @transform_1, window_bounds = array<i64: 128, 256>}, {transform_indices = @transform_2, window_bounds = array<i64: 64, 256>}]} {
    %c0 = arith.constant 0 : index
    %c0_0 = arith.constant 0 : index
    %0 = vector.load %arg2[%c0, %c0_0] : memref<64x128xf32, #tpu.memory_space<vmem>>, vector<64x128xf32>
    %c0_1 = arith.constant 0 : index
    %c0_2 = arith.constant 0 : index
    %1 = vector.load %arg3[%c0_1, %c0_2] : memref<128x256xf32, #tpu.memory_space<vmem>>, vector<128x256xf32>
    %cst = arith.constant dense<0.000000e+00> : vector<64x256xf32>
    %2 = tpu.matmul %0, %1, %cst {dimension_numbers = #tpu.dot_dimension_numbers<[1], [0], [0], [1], [0, 0, 1, 1], [], []>} : vector<64x128xf32>, vector<128x256xf32>, vector<64x256xf32> -> vector<64x256xf32>
    %c0_3 = arith.constant 0 : index
    %c0_4 = arith.constant 0 : index
    %3 = vector.load %arg4[%c0_3, %c0_4] : memref<64x256xf32, #tpu.memory_space<vmem>>, vector<64x256xf32>
    tpu.vector_store %arg4[%c0_3, %c0_4], %2 {strides = array<i32>} : memref<64x256xf32, #tpu.memory_space<vmem>>, vector<64x256xf32>,
    return
  }
  func.func @transform_0(%arg0: i32, %arg1: i32) -> (i32, i32) {
    %c0_i32 = arith.constant 0 : i32
    %c0_i32_0 = arith.constant 0 : i32
    return %arg0, %c0_i32 : i32, i32
  }
  func.func @transform_1(%arg0: i32, %arg1: i32) -> (i32, i32) {
    %c0_i32 = arith.constant 0 : i32
    %c0_i32_0 = arith.constant 0 : i32
    return %c0_i32, %arg1 : i32, i32
  }
  func.func @transform_2(%arg0: i32, %arg1: i32) -> (i32, i32) {
    %c0_i32 = arith.constant 0 : i32
    return %arg0, %arg1 : i32, i32
  }
}

module attributes {stable_mosaic.version = 11 : i64} {
  func.func @_matmul_bias_kernel(%arg0: i32, %arg1: i32, %arg2: memref<64x128xf32, #tpu.memory_space<vmem>>, %arg3: memref<128x512xf32, #tpu.memory_space<vmem>>, %arg4: memref<1x512xf32, #tpu.memory_space<vmem>>, %arg5: memref<64x512xf32, #tpu.memory_space<vmem>>) attributes {dimension_semantics = [#tpu.dimension_semantics<parallel>, #tpu.dimension_semantics<parallel>], iteration_bounds = array<i64: 1, 1>, scalar_prefetch = 0 : i64, scratch_operands = 0 : i64, tpu.core_type = #tpu.core_type<tc>, window_params = [{transform_indices = @transform_0, window_bounds = array<i64: 64, 128>}, {transform_indices = @transform_1, window_bounds = array<i64: 128, 512>}, {transform_indices = @transform_2, window_bounds = array<i64: 1, 512>}, {transform_indices = @transform_3, window_bounds = array<i64: 64, 512>}]} {
    %c0 = arith.constant 0 : index
    %c0_0 = arith.constant 0 : index
    %0 = vector.load %arg2[%c0, %c0_0] : memref<64x128xf32, #tpu.memory_space<vmem>>, vector<64x128xf32>
    %c0_1 = arith.constant 0 : index
    %c0_2 = arith.constant 0 : index
    %1 = vector.load %arg3[%c0_1, %c0_2] : memref<128x512xf32, #tpu.memory_space<vmem>>, vector<128x512xf32>
    %cst = arith.constant dense<0.000000e+00> : vector<64x512xf32>
    %2 = tpu.matmul %0, %1, %cst {dimension_numbers = #tpu.dot_dimension_numbers<[1], [0], [0], [1], [0, 0, 1, 1], [], []>} : vector<64x128xf32>, vector<128x512xf32>, vector<64x512xf32> -> vector<64x512xf32>
    %c0_3 = arith.constant 0 : index
    %c0_4 = arith.constant 0 : index
    %3 = vector.load %arg4[%c0_3, %c0_4] : memref<1x512xf32, #tpu.memory_space<vmem>>, vector<1x512xf32>
    %4 = vector.broadcast %3 : vector<1x512xf32> to vector<64x512xf32>
    %5 = arith.addf %2, %4 : vector<64x512xf32>
    %c0_5 = arith.constant 0 : index
    %c0_6 = arith.constant 0 : index
    %6 = vector.load %arg5[%c0_5, %c0_6] : memref<64x512xf32, #tpu.memory_space<vmem>>, vector<64x512xf32>
    tpu.vector_store %arg5[%c0_5, %c0_6], %5 {strides = array<i32>} : memref<64x512xf32, #tpu.memory_space<vmem>>, vector<64x512xf32>,
    return
  }
  func.func @transform_0(%arg0: i32, %arg1: i32) -> (i32, i32) {
    %c0_i32 = arith.constant 0 : i32
    %c0_i32_0 = arith.constant 0 : i32
    return %arg0, %c0_i32 : i32, i32
  }
  func.func @transform_1(%arg0: i32, %arg1: i32) -> (i32, i32) {
    %c0_i32 = arith.constant 0 : i32
    %c0_i32_0 = arith.constant 0 : i32
    return %c0_i32, %arg1 : i32, i32
  }
  func.func @transform_2(%arg0: i32, %arg1: i32) -> (i32, i32) {
    %c0_i32 = arith.constant 0 : i32
    %c0_i32_0 = arith.constant 0 : i32
    return %c0_i32, %arg1 : i32, i32
  }
  func.func @transform_3(%arg0: i32, %arg1: i32) -> (i32, i32) {
    %c0_i32 = arith.constant 0 : i32
    return %arg0, %arg1 : i32, i32
  }
}

module attributes {stable_mosaic.version = 11 : i64} {
  func.func @_lstm_recurrence_kernel(%arg0: i32, %arg1: memref<8x8x512xf32, #tpu.memory_space<vmem>>, %arg2: memref<128x512xf32, #tpu.memory_space<vmem>>, %arg3: memref<8x128xf32, #tpu.memory_space<vmem>>, %arg4: memref<8x128xf32, #tpu.memory_space<vmem>>, %arg5: memref<8x8x128xf32, #tpu.memory_space<vmem>>, %arg6: memref<8x128xf32, #tpu.memory_space<vmem>>, %arg7: memref<8x128xf32, #tpu.memory_space<vmem>>, %arg8: memref<8x128xf32, #tpu.memory_space<vmem>>, %arg9: memref<8x128xf32, #tpu.memory_space<vmem>>) attributes {dimension_semantics = [#tpu.dimension_semantics<arbitrary>], iteration_bounds = array<i64: 1>, scalar_prefetch = 0 : i64, scratch_operands = 2 : i64, tpu.core_type = #tpu.core_type<tc>, window_params = [{transform_indices = @transform_0, window_bounds = array<i64: 8, 8, 512>}, {pipeline_mode = #tpu.pipeline_mode<synchronous>, transform_indices = @transform_1, window_bounds = array<i64: 128, 512>}, {pipeline_mode = #tpu.pipeline_mode<synchronous>, transform_indices = @transform_2, window_bounds = array<i64: 8, 128>}, {pipeline_mode = #tpu.pipeline_mode<synchronous>, transform_indices = @transform_3, window_bounds = array<i64: 8, 128>}, {transform_indices = @transform_4, window_bounds = array<i64: 8, 8, 128>}, {pipeline_mode = #tpu.pipeline_mode<synchronous>, transform_indices = @transform_5, window_bounds = array<i64: 8, 128>}, {pipeline_mode = #tpu.pipeline_mode<synchronous>, transform_indices = @transform_6, window_bounds = array<i64: 8, 128>}]} {
    %c0_i32 = arith.constant 0 : i32
    %0 = arith.cmpi eq, %arg0, %c0_i32 : i32
    %1 = arith.extui %0 : i1 to i32
    %c0_i32_0 = arith.constant 0 : i32
    %2 = arith.cmpi ne, %1, %c0_i32_0 : i32
    scf.if %2 {
      %c0_76 = arith.constant 0 : index
      %c0_77 = arith.constant 0 : index
      %283 = vector.load %arg3[%c0_76, %c0_77] : memref<8x128xf32, #tpu.memory_space<vmem>>, vector<8x128xf32>
      %c0_78 = arith.constant 0 : index
      %c0_79 = arith.constant 0 : index
      %284 = vector.load %arg8[%c0_78, %c0_79] : memref<8x128xf32, #tpu.memory_space<vmem>>, vector<8x128xf32>
      tpu.vector_store %arg8[%c0_78, %c0_79], %283 {strides = array<i32>} : memref<8x128xf32, #tpu.memory_space<vmem>>, vector<8x128xf32>,
      %c0_80 = arith.constant 0 : index
      %c0_81 = arith.constant 0 : index
      %285 = vector.load %arg4[%c0_80, %c0_81] : memref<8x128xf32, #tpu.memory_space<vmem>>, vector<8x128xf32>
      %c0_82 = arith.constant 0 : index
      %c0_83 = arith.constant 0 : index
      %286 = vector.load %arg9[%c0_82, %c0_83] : memref<8x128xf32, #tpu.memory_space<vmem>>, vector<8x128xf32>
      tpu.vector_store %arg9[%c0_82, %c0_83], %285 {strides = array<i32>} : memref<8x128xf32, #tpu.memory_space<vmem>>, vector<8x128xf32>,
    } else {
    }
    %c0 = arith.constant 0 : index
    %c0_1 = arith.constant 0 : index
    %3 = vector.load %arg2[%c0, %c0_1] : memref<128x512xf32, #tpu.memory_space<vmem>>, vector<128x512xf32>
    %c0_2 = arith.constant 0 : index
    %c0_3 = arith.constant 0 : index
    %4 = vector.load %arg8[%c0_2, %c0_3] : memref<8x128xf32, #tpu.memory_space<vmem>>, vector<8x128xf32>
    %c0_4 = arith.constant 0 : index
    %c0_5 = arith.constant 0 : index
    %5 = vector.load %arg9[%c0_4, %c0_5] : memref<8x128xf32, #tpu.memory_space<vmem>>, vector<8x128xf32>
    %c0_i32_6 = arith.constant 0 : i32
    %6 = arith.index_cast %c0_i32_6 : i32 to index
    %c0_7 = arith.constant 0 : index
    %c0_8 = arith.constant 0 : index
    %7 = vector.load %arg1[%6, %c0_7, %c0_8] : memref<8x8x512xf32, #tpu.memory_space<vmem>>, vector<1x8x512xf32>
    %8 = vector.shape_cast %7 : vector<1x8x512xf32> to vector<8x512xf32>
    %cst = arith.constant dense<0.000000e+00> : vector<8x512xf32>
    %9 = tpu.matmul %4, %3, %cst {dimension_numbers = #tpu.dot_dimension_numbers<[1], [0], [0], [1], [0, 0, 1, 1], [], []>} : vector<8x128xf32>, vector<128x512xf32>, vector<8x512xf32> -> vector<8x512xf32>
    %10 = arith.addf %8, %9 : vector<8x512xf32>
    %11 = vector.extract_strided_slice %10 {offsets = [0, 0], sizes = [8, 128], strides = [1, 1]} : vector<8x512xf32> to vector<8x128xf32>
    %12 = arith.negf %11 : vector<8x128xf32>
    %13 = math.exp %12 : vector<8x128xf32>
    %cst_9 = arith.constant 1.000000e+00 : f32
    %14 = vector.broadcast %cst_9 : f32 to vector<8x128xf32>
    %15 = arith.addf %14, %13 : vector<8x128xf32>
    %16 = arith.divf %14, %15 : vector<8x128xf32>
    %17 = vector.extract_strided_slice %10 {offsets = [0, 128], sizes = [8, 128], strides = [1, 1]} : vector<8x512xf32> to vector<8x128xf32>
    %18 = arith.negf %17 : vector<8x128xf32>
    %19 = math.exp %18 : vector<8x128xf32>
    %cst_10 = arith.constant 1.000000e+00 : f32
    %20 = vector.broadcast %cst_10 : f32 to vector<8x128xf32>
    %21 = arith.addf %20, %19 : vector<8x128xf32>
    %22 = arith.divf %20, %21 : vector<8x128xf32>
    %23 = vector.extract_strided_slice %10 {offsets = [0, 256], sizes = [8, 128], strides = [1, 1]} : vector<8x512xf32> to vector<8x128xf32>
    %24 = math.tanh %23 : vector<8x128xf32>
    %25 = vector.extract_strided_slice %10 {offsets = [0, 384], sizes = [8, 128], strides = [1, 1]} : vector<8x512xf32> to vector<8x128xf32>
    %26 = arith.negf %25 : vector<8x128xf32>
    %27 = math.exp %26 : vector<8x128xf32>
    %cst_11 = arith.constant 1.000000e+00 : f32
    %28 = vector.broadcast %cst_11 : f32 to vector<8x128xf32>
    %29 = arith.addf %28, %27 : vector<8x128xf32>
    %30 = arith.divf %28, %29 : vector<8x128xf32>
    %31 = arith.mulf %22, %5 : vector<8x128xf32>
    %32 = arith.mulf %16, %24 : vector<8x128xf32>
    %33 = arith.addf %31, %32 : vector<8x128xf32>
    %34 = math.tanh %33 : vector<8x128xf32>
    %35 = arith.mulf %30, %34 : vector<8x128xf32>
    %36 = arith.index_cast %c0_i32_6 : i32 to index
    %c0_12 = arith.constant 0 : index
    %c0_13 = arith.constant 0 : index
    %37 = vector.load %arg5[%36, %c0_12, %c0_13] : memref<8x8x128xf32, #tpu.memory_space<vmem>>, vector<1x8x128xf32>
    %38 = vector.shape_cast %37 : vector<1x8x128xf32> to vector<8x128xf32>
    %39 = vector.shape_cast %35 : vector<8x128xf32> to vector<1x8x128xf32>
    tpu.vector_store %arg5[%36, %c0_12, %c0_13], %39 {strides = array<i32>} : memref<8x8x128xf32, #tpu.memory_space<vmem>>, vector<1x8x128xf32>,
    %c1_i32 = arith.constant 1 : i32
    %40 = arith.index_cast %c1_i32 : i32 to index
    %c0_14 = arith.constant 0 : index
    %c0_15 = arith.constant 0 : index
    %41 = vector.load %arg1[%40, %c0_14, %c0_15] : memref<8x8x512xf32, #tpu.memory_space<vmem>>, vector<1x8x512xf32>
    %42 = vector.shape_cast %41 : vector<1x8x512xf32> to vector<8x512xf32>
    %cst_16 = arith.constant dense<0.000000e+00> : vector<8x512xf32>
    %43 = tpu.matmul %35, %3, %cst_16 {dimension_numbers = #tpu.dot_dimension_numbers<[1], [0], [0], [1], [0, 0, 1, 1], [], []>} : vector<8x128xf32>, vector<128x512xf32>, vector<8x512xf32> -> vector<8x512xf32>
    %44 = arith.addf %42, %43 : vector<8x512xf32>
    %45 = vector.extract_strided_slice %44 {offsets = [0, 0], sizes = [8, 128], strides = [1, 1]} : vector<8x512xf32> to vector<8x128xf32>
    %46 = arith.negf %45 : vector<8x128xf32>
    %47 = math.exp %46 : vector<8x128xf32>
    %cst_17 = arith.constant 1.000000e+00 : f32
    %48 = vector.broadcast %cst_17 : f32 to vector<8x128xf32>
    %49 = arith.addf %48, %47 : vector<8x128xf32>
    %50 = arith.divf %48, %49 : vector<8x128xf32>
    %51 = vector.extract_strided_slice %44 {offsets = [0, 128], sizes = [8, 128], strides = [1, 1]} : vector<8x512xf32> to vector<8x128xf32>
    %52 = arith.negf %51 : vector<8x128xf32>
    %53 = math.exp %52 : vector<8x128xf32>
    %cst_18 = arith.constant 1.000000e+00 : f32
    %54 = vector.broadcast %cst_18 : f32 to vector<8x128xf32>
    %55 = arith.addf %54, %53 : vector<8x128xf32>
    %56 = arith.divf %54, %55 : vector<8x128xf32>
    %57 = vector.extract_strided_slice %44 {offsets = [0, 256], sizes = [8, 128], strides = [1, 1]} : vector<8x512xf32> to vector<8x128xf32>
    %58 = math.tanh %57 : vector<8x128xf32>
    %59 = vector.extract_strided_slice %44 {offsets = [0, 384], sizes = [8, 128], strides = [1, 1]} : vector<8x512xf32> to vector<8x128xf32>
    %60 = arith.negf %59 : vector<8x128xf32>
    %61 = math.exp %60 : vector<8x128xf32>
    %cst_19 = arith.constant 1.000000e+00 : f32
    %62 = vector.broadcast %cst_19 : f32 to vector<8x128xf32>
    %63 = arith.addf %62, %61 : vector<8x128xf32>
    %64 = arith.divf %62, %63 : vector<8x128xf32>
    %65 = arith.mulf %56, %33 : vector<8x128xf32>
    %66 = arith.mulf %50, %58 : vector<8x128xf32>
    %67 = arith.addf %65, %66 : vector<8x128xf32>
    %68 = math.tanh %67 : vector<8x128xf32>
    %69 = arith.mulf %64, %68 : vector<8x128xf32>
    %70 = arith.index_cast %c1_i32 : i32 to index
    %c0_20 = arith.constant 0 : index
    %c0_21 = arith.constant 0 : index
    %71 = vector.load %arg5[%70, %c0_20, %c0_21] : memref<8x8x128xf32, #tpu.memory_space<vmem>>, vector<1x8x128xf32>
    %72 = vector.shape_cast %71 : vector<1x8x128xf32> to vector<8x128xf32>
    %73 = vector.shape_cast %69 : vector<8x128xf32> to vector<1x8x128xf32>
    tpu.vector_store %arg5[%70, %c0_20, %c0_21], %73 {strides = array<i32>} : memref<8x8x128xf32, #tpu.memory_space<vmem>>, vector<1x8x128xf32>,
    %c2_i32 = arith.constant 2 : i32
    %74 = arith.index_cast %c2_i32 : i32 to index
    %c0_22 = arith.constant 0 : index
    %c0_23 = arith.constant 0 : index
    %75 = vector.load %arg1[%74, %c0_22, %c0_23] : memref<8x8x512xf32, #tpu.memory_space<vmem>>, vector<1x8x512xf32>
    %76 = vector.shape_cast %75 : vector<1x8x512xf32> to vector<8x512xf32>
    %cst_24 = arith.constant dense<0.000000e+00> : vector<8x512xf32>
    %77 = tpu.matmul %69, %3, %cst_24 {dimension_numbers = #tpu.dot_dimension_numbers<[1], [0], [0], [1], [0, 0, 1, 1], [], []>} : vector<8x128xf32>, vector<128x512xf32>, vector<8x512xf32> -> vector<8x512xf32>
    %78 = arith.addf %76, %77 : vector<8x512xf32>
    %79 = vector.extract_strided_slice %78 {offsets = [0, 0], sizes = [8, 128], strides = [1, 1]} : vector<8x512xf32> to vector<8x128xf32>
    %80 = arith.negf %79 : vector<8x128xf32>
    %81 = math.exp %80 : vector<8x128xf32>
    %cst_25 = arith.constant 1.000000e+00 : f32
    %82 = vector.broadcast %cst_25 : f32 to vector<8x128xf32>
    %83 = arith.addf %82, %81 : vector<8x128xf32>
    %84 = arith.divf %82, %83 : vector<8x128xf32>
    %85 = vector.extract_strided_slice %78 {offsets = [0, 128], sizes = [8, 128], strides = [1, 1]} : vector<8x512xf32> to vector<8x128xf32>
    %86 = arith.negf %85 : vector<8x128xf32>
    %87 = math.exp %86 : vector<8x128xf32>
    %cst_26 = arith.constant 1.000000e+00 : f32
    %88 = vector.broadcast %cst_26 : f32 to vector<8x128xf32>
    %89 = arith.addf %88, %87 : vector<8x128xf32>
    %90 = arith.divf %88, %89 : vector<8x128xf32>
    %91 = vector.extract_strided_slice %78 {offsets = [0, 256], sizes = [8, 128], strides = [1, 1]} : vector<8x512xf32> to vector<8x128xf32>
    %92 = math.tanh %91 : vector<8x128xf32>
    %93 = vector.extract_strided_slice %78 {offsets = [0, 384], sizes = [8, 128], strides = [1, 1]} : vector<8x512xf32> to vector<8x128xf32>
    %94 = arith.negf %93 : vector<8x128xf32>
    %95 = math.exp %94 : vector<8x128xf32>
    %cst_27 = arith.constant 1.000000e+00 : f32
    %96 = vector.broadcast %cst_27 : f32 to vector<8x128xf32>
    %97 = arith.addf %96, %95 : vector<8x128xf32>
    %98 = arith.divf %96, %97 : vector<8x128xf32>
    %99 = arith.mulf %90, %67 : vector<8x128xf32>
    %100 = arith.mulf %84, %92 : vector<8x128xf32>
    %101 = arith.addf %99, %100 : vector<8x128xf32>
    %102 = math.tanh %101 : vector<8x128xf32>
    %103 = arith.mulf %98, %102 : vector<8x128xf32>
    %104 = arith.index_cast %c2_i32 : i32 to index
    %c0_28 = arith.constant 0 : index
    %c0_29 = arith.constant 0 : index
    %105 = vector.load %arg5[%104, %c0_28, %c0_29] : memref<8x8x128xf32, #tpu.memory_space<vmem>>, vector<1x8x128xf32>
    %106 = vector.shape_cast %105 : vector<1x8x128xf32> to vector<8x128xf32>
    %107 = vector.shape_cast %103 : vector<8x128xf32> to vector<1x8x128xf32>
    tpu.vector_store %arg5[%104, %c0_28, %c0_29], %107 {strides = array<i32>} : memref<8x8x128xf32, #tpu.memory_space<vmem>>, vector<1x8x128xf32>,
    %c3_i32 = arith.constant 3 : i32
    %108 = arith.index_cast %c3_i32 : i32 to index
    %c0_30 = arith.constant 0 : index
    %c0_31 = arith.constant 0 : index
    %109 = vector.load %arg1[%108, %c0_30, %c0_31] : memref<8x8x512xf32, #tpu.memory_space<vmem>>, vector<1x8x512xf32>
    %110 = vector.shape_cast %109 : vector<1x8x512xf32> to vector<8x512xf32>
    %cst_32 = arith.constant dense<0.000000e+00> : vector<8x512xf32>
    %111 = tpu.matmul %103, %3, %cst_32 {dimension_numbers = #tpu.dot_dimension_numbers<[1], [0], [0], [1], [0, 0, 1, 1], [], []>} : vector<8x128xf32>, vector<128x512xf32>, vector<8x512xf32> -> vector<8x512xf32>
    %112 = arith.addf %110, %111 : vector<8x512xf32>
    %113 = vector.extract_strided_slice %112 {offsets = [0, 0], sizes = [8, 128], strides = [1, 1]} : vector<8x512xf32> to vector<8x128xf32>
    %114 = arith.negf %113 : vector<8x128xf32>
    %115 = math.exp %114 : vector<8x128xf32>
    %cst_33 = arith.constant 1.000000e+00 : f32
    %116 = vector.broadcast %cst_33 : f32 to vector<8x128xf32>
    %117 = arith.addf %116, %115 : vector<8x128xf32>
    %118 = arith.divf %116, %117 : vector<8x128xf32>
    %119 = vector.extract_strided_slice %112 {offsets = [0, 128], sizes = [8, 128], strides = [1, 1]} : vector<8x512xf32> to vector<8x128xf32>
    %120 = arith.negf %119 : vector<8x128xf32>
    %121 = math.exp %120 : vector<8x128xf32>
    %cst_34 = arith.constant 1.000000e+00 : f32
    %122 = vector.broadcast %cst_34 : f32 to vector<8x128xf32>
    %123 = arith.addf %122, %121 : vector<8x128xf32>
    %124 = arith.divf %122, %123 : vector<8x128xf32>
    %125 = vector.extract_strided_slice %112 {offsets = [0, 256], sizes = [8, 128], strides = [1, 1]} : vector<8x512xf32> to vector<8x128xf32>
    %126 = math.tanh %125 : vector<8x128xf32>
    %127 = vector.extract_strided_slice %112 {offsets = [0, 384], sizes = [8, 128], strides = [1, 1]} : vector<8x512xf32> to vector<8x128xf32>
    %128 = arith.negf %127 : vector<8x128xf32>
    %129 = math.exp %128 : vector<8x128xf32>
    %cst_35 = arith.constant 1.000000e+00 : f32
    %130 = vector.broadcast %cst_35 : f32 to vector<8x128xf32>
    %131 = arith.addf %130, %129 : vector<8x128xf32>
    %132 = arith.divf %130, %131 : vector<8x128xf32>
    %133 = arith.mulf %124, %101 : vector<8x128xf32>
    %134 = arith.mulf %118, %126 : vector<8x128xf32>
    %135 = arith.addf %133, %134 : vector<8x128xf32>
    %136 = math.tanh %135 : vector<8x128xf32>
    %137 = arith.mulf %132, %136 : vector<8x128xf32>
    %138 = arith.index_cast %c3_i32 : i32 to index
    %c0_36 = arith.constant 0 : index
    %c0_37 = arith.constant 0 : index
    %139 = vector.load %arg5[%138, %c0_36, %c0_37] : memref<8x8x128xf32, #tpu.memory_space<vmem>>, vector<1x8x128xf32>
    %140 = vector.shape_cast %139 : vector<1x8x128xf32> to vector<8x128xf32>
    %141 = vector.shape_cast %137 : vector<8x128xf32> to vector<1x8x128xf32>
    tpu.vector_store %arg5[%138, %c0_36, %c0_37], %141 {strides = array<i32>} : memref<8x8x128xf32, #tpu.memory_space<vmem>>, vector<1x8x128xf32>,
    %c4_i32 = arith.constant 4 : i32
    %142 = arith.index_cast %c4_i32 : i32 to index
    %c0_38 = arith.constant 0 : index
    %c0_39 = arith.constant 0 : index
    %143 = vector.load %arg1[%142, %c0_38, %c0_39] : memref<8x8x512xf32, #tpu.memory_space<vmem>>, vector<1x8x512xf32>
    %144 = vector.shape_cast %143 : vector<1x8x512xf32> to vector<8x512xf32>
    %cst_40 = arith.constant dense<0.000000e+00> : vector<8x512xf32>
    %145 = tpu.matmul %137, %3, %cst_40 {dimension_numbers = #tpu.dot_dimension_numbers<[1], [0], [0], [1], [0, 0, 1, 1], [], []>} : vector<8x128xf32>, vector<128x512xf32>, vector<8x512xf32> -> vector<8x512xf32>
    %146 = arith.addf %144, %145 : vector<8x512xf32>
    %147 = vector.extract_strided_slice %146 {offsets = [0, 0], sizes = [8, 128], strides = [1, 1]} : vector<8x512xf32> to vector<8x128xf32>
    %148 = arith.negf %147 : vector<8x128xf32>
    %149 = math.exp %148 : vector<8x128xf32>
    %cst_41 = arith.constant 1.000000e+00 : f32
    %150 = vector.broadcast %cst_41 : f32 to vector<8x128xf32>
    %151 = arith.addf %150, %149 : vector<8x128xf32>
    %152 = arith.divf %150, %151 : vector<8x128xf32>
    %153 = vector.extract_strided_slice %146 {offsets = [0, 128], sizes = [8, 128], strides = [1, 1]} : vector<8x512xf32> to vector<8x128xf32>
    %154 = arith.negf %153 : vector<8x128xf32>
    %155 = math.exp %154 : vector<8x128xf32>
    %cst_42 = arith.constant 1.000000e+00 : f32
    %156 = vector.broadcast %cst_42 : f32 to vector<8x128xf32>
    %157 = arith.addf %156, %155 : vector<8x128xf32>
    %158 = arith.divf %156, %157 : vector<8x128xf32>
    %159 = vector.extract_strided_slice %146 {offsets = [0, 256], sizes = [8, 128], strides = [1, 1]} : vector<8x512xf32> to vector<8x128xf32>
    %160 = math.tanh %159 : vector<8x128xf32>
    %161 = vector.extract_strided_slice %146 {offsets = [0, 384], sizes = [8, 128], strides = [1, 1]} : vector<8x512xf32> to vector<8x128xf32>
    %162 = arith.negf %161 : vector<8x128xf32>
    %163 = math.exp %162 : vector<8x128xf32>
    %cst_43 = arith.constant 1.000000e+00 : f32
    %164 = vector.broadcast %cst_43 : f32 to vector<8x128xf32>
    %165 = arith.addf %164, %163 : vector<8x128xf32>
    %166 = arith.divf %164, %165 : vector<8x128xf32>
    %167 = arith.mulf %158, %135 : vector<8x128xf32>
    %168 = arith.mulf %152, %160 : vector<8x128xf32>
    %169 = arith.addf %167, %168 : vector<8x128xf32>
    %170 = math.tanh %169 : vector<8x128xf32>
    %171 = arith.mulf %166, %170 : vector<8x128xf32>
    %172 = arith.index_cast %c4_i32 : i32 to index
    %c0_44 = arith.constant 0 : index
    %c0_45 = arith.constant 0 : index
    %173 = vector.load %arg5[%172, %c0_44, %c0_45] : memref<8x8x128xf32, #tpu.memory_space<vmem>>, vector<1x8x128xf32>
    %174 = vector.shape_cast %173 : vector<1x8x128xf32> to vector<8x128xf32>
    %175 = vector.shape_cast %171 : vector<8x128xf32> to vector<1x8x128xf32>
    tpu.vector_store %arg5[%172, %c0_44, %c0_45], %175 {strides = array<i32>} : memref<8x8x128xf32, #tpu.memory_space<vmem>>, vector<1x8x128xf32>,
    %c5_i32 = arith.constant 5 : i32
    %176 = arith.index_cast %c5_i32 : i32 to index
    %c0_46 = arith.constant 0 : index
    %c0_47 = arith.constant 0 : index
    %177 = vector.load %arg1[%176, %c0_46, %c0_47] : memref<8x8x512xf32, #tpu.memory_space<vmem>>, vector<1x8x512xf32>
    %178 = vector.shape_cast %177 : vector<1x8x512xf32> to vector<8x512xf32>
    %cst_48 = arith.constant dense<0.000000e+00> : vector<8x512xf32>
    %179 = tpu.matmul %171, %3, %cst_48 {dimension_numbers = #tpu.dot_dimension_numbers<[1], [0], [0], [1], [0, 0, 1, 1], [], []>} : vector<8x128xf32>, vector<128x512xf32>, vector<8x512xf32> -> vector<8x512xf32>
    %180 = arith.addf %178, %179 : vector<8x512xf32>
    %181 = vector.extract_strided_slice %180 {offsets = [0, 0], sizes = [8, 128], strides = [1, 1]} : vector<8x512xf32> to vector<8x128xf32>
    %182 = arith.negf %181 : vector<8x128xf32>
    %183 = math.exp %182 : vector<8x128xf32>
    %cst_49 = arith.constant 1.000000e+00 : f32
    %184 = vector.broadcast %cst_49 : f32 to vector<8x128xf32>
    %185 = arith.addf %184, %183 : vector<8x128xf32>
    %186 = arith.divf %184, %185 : vector<8x128xf32>
    %187 = vector.extract_strided_slice %180 {offsets = [0, 128], sizes = [8, 128], strides = [1, 1]} : vector<8x512xf32> to vector<8x128xf32>
    %188 = arith.negf %187 : vector<8x128xf32>
    %189 = math.exp %188 : vector<8x128xf32>
    %cst_50 = arith.constant 1.000000e+00 : f32
    %190 = vector.broadcast %cst_50 : f32 to vector<8x128xf32>
    %191 = arith.addf %190, %189 : vector<8x128xf32>
    %192 = arith.divf %190, %191 : vector<8x128xf32>
    %193 = vector.extract_strided_slice %180 {offsets = [0, 256], sizes = [8, 128], strides = [1, 1]} : vector<8x512xf32> to vector<8x128xf32>
    %194 = math.tanh %193 : vector<8x128xf32>
    %195 = vector.extract_strided_slice %180 {offsets = [0, 384], sizes = [8, 128], strides = [1, 1]} : vector<8x512xf32> to vector<8x128xf32>
    %196 = arith.negf %195 : vector<8x128xf32>
    %197 = math.exp %196 : vector<8x128xf32>
    %cst_51 = arith.constant 1.000000e+00 : f32
    %198 = vector.broadcast %cst_51 : f32 to vector<8x128xf32>
    %199 = arith.addf %198, %197 : vector<8x128xf32>
    %200 = arith.divf %198, %199 : vector<8x128xf32>
    %201 = arith.mulf %192, %169 : vector<8x128xf32>
    %202 = arith.mulf %186, %194 : vector<8x128xf32>
    %203 = arith.addf %201, %202 : vector<8x128xf32>
    %204 = math.tanh %203 : vector<8x128xf32>
    %205 = arith.mulf %200, %204 : vector<8x128xf32>
    %206 = arith.index_cast %c5_i32 : i32 to index
    %c0_52 = arith.constant 0 : index
    %c0_53 = arith.constant 0 : index
    %207 = vector.load %arg5[%206, %c0_52, %c0_53] : memref<8x8x128xf32, #tpu.memory_space<vmem>>, vector<1x8x128xf32>
    %208 = vector.shape_cast %207 : vector<1x8x128xf32> to vector<8x128xf32>
    %209 = vector.shape_cast %205 : vector<8x128xf32> to vector<1x8x128xf32>
    tpu.vector_store %arg5[%206, %c0_52, %c0_53], %209 {strides = array<i32>} : memref<8x8x128xf32, #tpu.memory_space<vmem>>, vector<1x8x128xf32>,
    %c6_i32 = arith.constant 6 : i32
    %210 = arith.index_cast %c6_i32 : i32 to index
    %c0_54 = arith.constant 0 : index
    %c0_55 = arith.constant 0 : index
    %211 = vector.load %arg1[%210, %c0_54, %c0_55] : memref<8x8x512xf32, #tpu.memory_space<vmem>>, vector<1x8x512xf32>
    %212 = vector.shape_cast %211 : vector<1x8x512xf32> to vector<8x512xf32>
    %cst_56 = arith.constant dense<0.000000e+00> : vector<8x512xf32>
    %213 = tpu.matmul %205, %3, %cst_56 {dimension_numbers = #tpu.dot_dimension_numbers<[1], [0], [0], [1], [0, 0, 1, 1], [], []>} : vector<8x128xf32>, vector<128x512xf32>, vector<8x512xf32> -> vector<8x512xf32>
    %214 = arith.addf %212, %213 : vector<8x512xf32>
    %215 = vector.extract_strided_slice %214 {offsets = [0, 0], sizes = [8, 128], strides = [1, 1]} : vector<8x512xf32> to vector<8x128xf32>
    %216 = arith.negf %215 : vector<8x128xf32>
    %217 = math.exp %216 : vector<8x128xf32>
    %cst_57 = arith.constant 1.000000e+00 : f32
    %218 = vector.broadcast %cst_57 : f32 to vector<8x128xf32>
    %219 = arith.addf %218, %217 : vector<8x128xf32>
    %220 = arith.divf %218, %219 : vector<8x128xf32>
    %221 = vector.extract_strided_slice %214 {offsets = [0, 128], sizes = [8, 128], strides = [1, 1]} : vector<8x512xf32> to vector<8x128xf32>
    %222 = arith.negf %221 : vector<8x128xf32>
    %223 = math.exp %222 : vector<8x128xf32>
    %cst_58 = arith.constant 1.000000e+00 : f32
    %224 = vector.broadcast %cst_58 : f32 to vector<8x128xf32>
    %225 = arith.addf %224, %223 : vector<8x128xf32>
    %226 = arith.divf %224, %225 : vector<8x128xf32>
    %227 = vector.extract_strided_slice %214 {offsets = [0, 256], sizes = [8, 128], strides = [1, 1]} : vector<8x512xf32> to vector<8x128xf32>
    %228 = math.tanh %227 : vector<8x128xf32>
    %229 = vector.extract_strided_slice %214 {offsets = [0, 384], sizes = [8, 128], strides = [1, 1]} : vector<8x512xf32> to vector<8x128xf32>
    %230 = arith.negf %229 : vector<8x128xf32>
    %231 = math.exp %230 : vector<8x128xf32>
    %cst_59 = arith.constant 1.000000e+00 : f32
    %232 = vector.broadcast %cst_59 : f32 to vector<8x128xf32>
    %233 = arith.addf %232, %231 : vector<8x128xf32>
    %234 = arith.divf %232, %233 : vector<8x128xf32>
    %235 = arith.mulf %226, %203 : vector<8x128xf32>
    %236 = arith.mulf %220, %228 : vector<8x128xf32>
    %237 = arith.addf %235, %236 : vector<8x128xf32>
    %238 = math.tanh %237 : vector<8x128xf32>
    %239 = arith.mulf %234, %238 : vector<8x128xf32>
    %240 = arith.index_cast %c6_i32 : i32 to index
    %c0_60 = arith.constant 0 : index
    %c0_61 = arith.constant 0 : index
    %241 = vector.load %arg5[%240, %c0_60, %c0_61] : memref<8x8x128xf32, #tpu.memory_space<vmem>>, vector<1x8x128xf32>
    %242 = vector.shape_cast %241 : vector<1x8x128xf32> to vector<8x128xf32>
    %243 = vector.shape_cast %239 : vector<8x128xf32> to vector<1x8x128xf32>
    tpu.vector_store %arg5[%240, %c0_60, %c0_61], %243 {strides = array<i32>} : memref<8x8x128xf32, #tpu.memory_space<vmem>>, vector<1x8x128xf32>,
    %c7_i32 = arith.constant 7 : i32
    %244 = arith.index_cast %c7_i32 : i32 to index
    %c0_62 = arith.constant 0 : index
    %c0_63 = arith.constant 0 : index
    %245 = vector.load %arg1[%244, %c0_62, %c0_63] : memref<8x8x512xf32, #tpu.memory_space<vmem>>, vector<1x8x512xf32>
    %246 = vector.shape_cast %245 : vector<1x8x512xf32> to vector<8x512xf32>
    %cst_64 = arith.constant dense<0.000000e+00> : vector<8x512xf32>
    %247 = tpu.matmul %239, %3, %cst_64 {dimension_numbers = #tpu.dot_dimension_numbers<[1], [0], [0], [1], [0, 0, 1, 1], [], []>} : vector<8x128xf32>, vector<128x512xf32>, vector<8x512xf32> -> vector<8x512xf32>
    %248 = arith.addf %246, %247 : vector<8x512xf32>
    %249 = vector.extract_strided_slice %248 {offsets = [0, 0], sizes = [8, 128], strides = [1, 1]} : vector<8x512xf32> to vector<8x128xf32>
    %250 = arith.negf %249 : vector<8x128xf32>
    %251 = math.exp %250 : vector<8x128xf32>
    %cst_65 = arith.constant 1.000000e+00 : f32
    %252 = vector.broadcast %cst_65 : f32 to vector<8x128xf32>
    %253 = arith.addf %252, %251 : vector<8x128xf32>
    %254 = arith.divf %252, %253 : vector<8x128xf32>
    %255 = vector.extract_strided_slice %248 {offsets = [0, 128], sizes = [8, 128], strides = [1, 1]} : vector<8x512xf32> to vector<8x128xf32>
    %256 = arith.negf %255 : vector<8x128xf32>
    %257 = math.exp %256 : vector<8x128xf32>
    %cst_66 = arith.constant 1.000000e+00 : f32
    %258 = vector.broadcast %cst_66 : f32 to vector<8x128xf32>
    %259 = arith.addf %258, %257 : vector<8x128xf32>
    %260 = arith.divf %258, %259 : vector<8x128xf32>
    %261 = vector.extract_strided_slice %248 {offsets = [0, 256], sizes = [8, 128], strides = [1, 1]} : vector<8x512xf32> to vector<8x128xf32>
    %262 = math.tanh %261 : vector<8x128xf32>
    %263 = vector.extract_strided_slice %248 {offsets = [0, 384], sizes = [8, 128], strides = [1, 1]} : vector<8x512xf32> to vector<8x128xf32>
    %264 = arith.negf %263 : vector<8x128xf32>
    %265 = math.exp %264 : vector<8x128xf32>
    %cst_67 = arith.constant 1.000000e+00 : f32
    %266 = vector.broadcast %cst_67 : f32 to vector<8x128xf32>
    %267 = arith.addf %266, %265 : vector<8x128xf32>
    %268 = arith.divf %266, %267 : vector<8x128xf32>
    %269 = arith.mulf %260, %237 : vector<8x128xf32>
    %270 = arith.mulf %254, %262 : vector<8x128xf32>
    %271 = arith.addf %269, %270 : vector<8x128xf32>
    %272 = math.tanh %271 : vector<8x128xf32>
    %273 = arith.mulf %268, %272 : vector<8x128xf32>
    %274 = arith.index_cast %c7_i32 : i32 to index
    %c0_68 = arith.constant 0 : index
    %c0_69 = arith.constant 0 : index
    %275 = vector.load %arg5[%274, %c0_68, %c0_69] : memref<8x8x128xf32, #tpu.memory_space<vmem>>, vector<1x8x128xf32>
    %276 = vector.shape_cast %275 : vector<1x8x128xf32> to vector<8x128xf32>
    %277 = vector.shape_cast %273 : vector<8x128xf32> to vector<1x8x128xf32>
    tpu.vector_store %arg5[%274, %c0_68, %c0_69], %277 {strides = array<i32>} : memref<8x8x128xf32, #tpu.memory_space<vmem>>, vector<1x8x128xf32>,
    %c8_i32 = arith.constant 8 : i32
    %c0_70 = arith.constant 0 : index
    %c0_71 = arith.constant 0 : index
    %278 = vector.load %arg8[%c0_70, %c0_71] : memref<8x128xf32, #tpu.memory_space<vmem>>, vector<8x128xf32>
    tpu.vector_store %arg8[%c0_70, %c0_71], %273 {strides = array<i32>} : memref<8x128xf32, #tpu.memory_space<vmem>>, vector<8x128xf32>,
    %c0_72 = arith.constant 0 : index
    %c0_73 = arith.constant 0 : index
    %279 = vector.load %arg9[%c0_72, %c0_73] : memref<8x128xf32, #tpu.memory_space<vmem>>, vector<8x128xf32>
    tpu.vector_store %arg9[%c0_72, %c0_73], %271 {strides = array<i32>} : memref<8x128xf32, #tpu.memory_space<vmem>>, vector<8x128xf32>,
    %c0_i32_74 = arith.constant 0 : i32
    %280 = arith.cmpi eq, %arg0, %c0_i32_74 : i32
    %281 = arith.extui %280 : i1 to i32
    %c0_i32_75 = arith.constant 0 : i32
    %282 = arith.cmpi ne, %281, %c0_i32_75 : i32
    scf.if %282 {
      %c0_76 = arith.constant 0 : index
      %c0_77 = arith.constant 0 : index
      %283 = vector.load %arg6[%c0_76, %c0_77] : memref<8x128xf32, #tpu.memory_space<vmem>>, vector<8x128xf32>
      tpu.vector_store %arg6[%c0_76, %c0_77], %273 {strides = array<i32>} : memref<8x128xf32, #tpu.memory_space<vmem>>, vector<8x128xf32>,
      %c0_78 = arith.constant 0 : index
      %c0_79 = arith.constant 0 : index
      %284 = vector.load %arg7[%c0_78, %c0_79] : memref<8x128xf32, #tpu.memory_space<vmem>>, vector<8x128xf32>
      tpu.vector_store %arg7[%c0_78, %c0_79], %271 {strides = array<i32>} : memref<8x128xf32, #tpu.memory_space<vmem>>, vector<8x128xf32>,
    } else {
    }
    return
  }
  func.func @transform_0(%arg0: i32) -> (i32, i32, i32) {
    %c0_i32 = arith.constant 0 : i32
    %c0_i32_0 = arith.constant 0 : i32
    %c0_i32_1 = arith.constant 0 : i32
    return %arg0, %c0_i32, %c0_i32_0 : i32, i32, i32
  }
  func.func @transform_1(%arg0: i32) -> (i32, i32) {
    %c0_i32 = arith.constant 0 : i32
    %c0_i32_0 = arith.constant 0 : i32
    %c0_i32_1 = arith.constant 0 : i32
    return %c0_i32, %c0_i32_0 : i32, i32
  }
  func.func @transform_2(%arg0: i32) -> (i32, i32) {
    %c0_i32 = arith.constant 0 : i32
    %c0_i32_0 = arith.constant 0 : i32
    %c0_i32_1 = arith.constant 0 : i32
    return %c0_i32, %c0_i32_0 : i32, i32
  }
  func.func @transform_3(%arg0: i32) -> (i32, i32) {
    %c0_i32 = arith.constant 0 : i32
    %c0_i32_0 = arith.constant 0 : i32
    %c0_i32_1 = arith.constant 0 : i32
    return %c0_i32, %c0_i32_0 : i32, i32
  }
  func.func @transform_4(%arg0: i32) -> (i32, i32, i32) {
    %c0_i32 = arith.constant 0 : i32
    %c0_i32_0 = arith.constant 0 : i32
    %c0_i32_1 = arith.constant 0 : i32
    return %arg0, %c0_i32, %c0_i32_0 : i32, i32, i32
  }
  func.func @transform_5(%arg0: i32) -> (i32, i32) {
    %c0_i32 = arith.constant 0 : i32
    %c0_i32_0 = arith.constant 0 : i32
    %c0_i32_1 = arith.constant 0 : i32
    return %c0_i32, %c0_i32_0 : i32, i32
  }
  func.func @transform_6(%arg0: i32) -> (i32, i32) {
    %c0_i32 = arith.constant 0 : i32
    %c0_i32_0 = arith.constant 0 : i32
    %c0_i32_1 = arith.constant 0 : i32
    return %c0_i32, %c0_i32_0 : i32, i32
  }
}

</mosaic_0001>

<llo_original>
// kernel: lstm_model_forward.5
$region0: #{lstm_model_forward.5}
  #allocation0 [shape = 'u32[]', space=smem, size = 0x4, offset = 0x4, fixed_abs, tag = 'smem constant byte address 0x4 - core index']
  #allocation1 [shape = 'u32[144,128]{1,0:T(1,128)}', space=vmem, size = 0x12000, scoped, tag = 'internal scratch']
  %s0 = inlined_call_operand.vmem [shape: f32[64,128], index: 0, kind: input, shape index: {}]
  %s1 = inlined_call_operand.vmem [shape: f32[128,256], index: 1, kind: input, shape index: {}]
  %s2 = inlined_call_operand.hbm [shape: f32[64,256], index: 2, kind: output, shape index: {}]
  %s3 = sld [smem:[#allocation0]]
  $region18: #{lstm_model_forward.5} parent=0
    _
  %s5 = ssub.s32 1, %s3
  %s6 = scalar_select 0, %s5, %s3
  $region1: #{lstm_model_forward.5} parent=0
    #allocation2 [shape = 'u8[65536]{0}', space=vmem, size = 0x10000, scoped, tag = 'output window, operand 0, single buffered']
    #allocation3 [shape = 's32[1]{0}', space=sflag, size = 0x4, scoped, tag = 'scoped memory for lstm_model_forward.5']
    %7 = vsyncpa [#allocation3], 0
    // Predicated region
    $region2: #{lstm_model_forward.5} parent=1 // pred_check
      _
    $region3: #{lstm_model_forward.5} parent=1 // pred_check_branch
      %9 = sbr.rel (0) target = $region5
    $region4: #{lstm_model_forward.5} parent=1 // pred_region
      _
    $region5: #{lstm_model_forward.5} parent=1 // pred_fallthru
      _
    // Predicated region
    $region6: #{lstm_model_forward.5} parent=1 // pred_check
      _
    $region7: #{lstm_model_forward.5} parent=1 // pred_check_branch
      %11 = sbr.rel (0) target = $region9
    $region8: #{lstm_model_forward.5} parent=1 // pred_region
      _
    $region9: #{lstm_model_forward.5} parent=1 // pred_fallthru
      _
    %v12 = vld [vmem:[%s0] sm:$0xff]
    %v13 = vld [vmem:[%s0 + $0x8] sm:$0xff]
    %v14 = vld [vmem:[%s0 + $0x10] sm:$0xff]
    %v15 = vld [vmem:[%s0 + $0x18] sm:$0xff]
    %v16 = vld [vmem:[%s0 + $0x20] sm:$0xff]
    %v17 = vld [vmem:[%s0 + $0x28] sm:$0xff]
    %v18 = vld [vmem:[%s0 + $0x30] sm:$0xff]
    %v19 = vld [vmem:[%s0 + $0x38] sm:$0xff]
    %v20 = vld [vmem:[%s1] sm:$0xff]
    %v21 = vld [vmem:[%s1 + $0x8] sm:$0xff]
    %v22 = vld [vmem:[%s1 + $0x10] sm:$0xff]
    %v23 = vld [vmem:[%s1 + $0x18] sm:$0xff]
    %v24 = vld [vmem:[%s1 + $0x20] sm:$0xff]
    %v25 = vld [vmem:[%s1 + $0x28] sm:$0xff]
    %v26 = vld [vmem:[%s1 + $0x30] sm:$0xff]
    %v27 = vld [vmem:[%s1 + $0x38] sm:$0xff]
    %v28 = vld [vmem:[%s1 + $0x40] sm:$0xff]
    %v29 = vld [vmem:[%s1 + $0x48] sm:$0xff]
    %v30 = vld [vmem:[%s1 + $0x50] sm:$0xff]
    %v31 = vld [vmem:[%s1 + $0x58] sm:$0xff]
    %v32 = vld [vmem:[%s1 + $0x60] sm:$0xff]
    %v33 = vld [vmem:[%s1 + $0x68] sm:$0xff]
    %v34 = vld [vmem:[%s1 + $0x70] sm:$0xff]
    %v35 = vld [vmem:[%s1 + $0x78] sm:$0xff]
    %v36 = vld [vmem:[%s1 + $0x80] sm:$0xff]
    %v37 = vld [vmem:[%s1 + $0x88] sm:$0xff]
    %v38 = vld [vmem:[%s1 + $0x90] sm:$0xff]
    %v39 = vld [vmem:[%s1 + $0x98] sm:$0xff]
    %v40 = vld [vmem:[%s1 + $0xa0] sm:$0xff]
    %v41 = vld [vmem:[%s1 + $0xa8] sm:$0xff]
    %v42 = vld [vmem:[%s1 + $0xb0] sm:$0xff]
    %v43 = vld [vmem:[%s1 + $0xb8] sm:$0xff]
    %v44 = vld [vmem:[%s1 + $0xc0] sm:$0xff]
    %v45 = vld [vmem:[%s1 + $0xc8] sm:$0xff]
    %v46 = vld [vmem:[%s1 + $0xd0] sm:$0xff]
    %v47 = vld [vmem:[%s1 + $0xd8] sm:$0xff]
    %v48 = vld [vmem:[%s1 + $0xe0] sm:$0xff]
    %v49 = vld [vmem:[%s1 + $0xe8] sm:$0xff]
    %v50 = vld [vmem:[%s1 + $0xf0] sm:$0xff]
    %v51 = vld [vmem:[%s1 + $0xf8] sm:$0xff]
    %52 = vmatprep.subr.mxu0 %v51
    %53 = vmatpush1.msra.mxu0 %v50
    %54 = vmatprep.subr.mxu0 %v49
    %55 = vmatpush1.msra.mxu0 %v48
    %56 = vmatprep.subr.mxu0 %v47
    %57 = vmatpush1.msra.mxu0 %v46
    %58 = vmatprep.subr.mxu0 %v45
    %59 = vmatpush1.msra.mxu0 %v44
    %60 = vmatprep.subr.mxu0 %v43
    %61 = vmatpush1.msra.mxu0 %v42
    %62 = vmatprep.subr.mxu0 %v41
    %63 = vmatpush1.msra.mxu0 %v40
    %64 = vmatprep.subr.mxu0 %v39
    %65 = vmatpush1.msra.mxu0 %v38
    %66 = vmatprep.subr.mxu0 %v37
    %67 = vmatpush1.msra.mxu0 %v36
    %68 = vmatprep.subr.mxu0 %v35
    %69 = vmatpush1.msra.mxu0 %v34
    %70 = vmatprep.subr.mxu0 %v33
    %71 = vmatpush1.msra.mxu0 %v32
    %72 = vmatprep.subr.mxu0 %v31
    %73 = vmatpush1.msra.mxu0 %v30
    %74 = vmatprep.subr.mxu0 %v29
    %75 = vmatpush1.msra.mxu0 %v28
    %76 = vmatprep.subr.mxu0 %v27
    %77 = vmatpush1.msra.mxu0 %v26
    %78 = vmatprep.subr.mxu0 %v25
    %79 = vmatpush1.msra.mxu0 %v24
    %80 = vmatprep.subr.mxu0 %v23
    %81 = vmatpush1.msra.mxu0 %v22
    %82 = vmatprep.subr.mxu0 %v21
    %83 = vmatpush1.msra.mxu0 %v20
    %84 = vmatprep.subr.mxu0 0.0
    %85 = vmatpush2.msra.mxu0 0.0
    %86 = vmatprep.subr.mxu0 0.0
    %87 = vmatpush2.msra.mxu0 0.0
    %88 = vmatprep.subr.mxu0 0.0
    %89 = vmatpush2.msra.mxu0 0.0
    %90 = vmatprep.subr.mxu0 0.0
    %91 = vmatpush2.msra.mxu0 0.0
    %92 = vmatprep.subr.mxu0 0.0
    %93 = vmatpush2.msra.mxu0 0.0
    %94 = vmatprep.subr.mxu0 0.0
    %95 = vmatpush2.msra.mxu0 0.0
    %96 = vmatprep.subr.mxu0 0.0
    %97 = vmatpush2.msra.mxu0 0.0
    %98 = vmatprep.subr.mxu0 0.0
    %99 = vmatpush2.msra.mxu0 0.0
    %100 = vmatprep.subr.mxu0 0.0
    %101 = vmatpush2.msra.mxu0 0.0
    %102 = vmatprep.subr.mxu0 0.0
    %103 = vmatpush2.msra.mxu0 0.0
    %104 = vmatprep.subr.mxu0 0.0
    %105 = vmatpush2.msra.mxu0 0.0
    %106 = vmatprep.subr.mxu0 0.0
    %107 = vmatpush2.msra.mxu0 0.0
    %108 = vmatprep.subr.mxu0 0.0
    %109 = vmatpush2.msra.mxu0 0.0
    %110 = vmatprep.subr.mxu0 0.0
    %111 = vmatpush2.msra.mxu0 0.0
    %112 = vmatprep.subr.mxu0 0.0
    %113 = vmatpush2.msra.mxu0 0.0
    %114 = vmatprep.subr.mxu0 0.0
    %115 = vmatpush2.msra.mxu0 0.0
    %116 = vmatprep.mubr.f32.mxu0 0.0
    %117 = vmatmul.mubr.f32.gmra.mxu0 %v12
    %v118 = vpop.f32.mrf.mxu0
    %v119 = vadd.f32 0.0, %v118
    %v120 = vpop.f32.mrf.mxu0
    %v121 = vadd.f32 0.0, %v120
    %122 = vmatprep.mubr.f32.mxu0 0.0
    %123 = vmatmul.mubr.f32.gmra.mxu0 %v13
    %v124 = vpop.f32.mrf.mxu0
    %v125 = vadd.f32 0.0, %v124
    %v126 = vpop.f32.mrf.mxu0
    %v127 = vadd.f32 0.0, %v126
    %128 = vmatprep.mubr.f32.mxu0 0.0
    %129 = vmatmul.mubr.f32.gmra.mxu0 %v14
    %v130 = vpop.f32.mrf.mxu0
    %v131 = vadd.f32 0.0, %v130
    %v132 = vpop.f32.mrf.mxu0
    %v133 = vadd.f32 0.0, %v132
    %134 = vmatprep.mubr.f32.mxu0 0.0
    %135 = vmatmul.mubr.f32.gmra.mxu0 %v15
    %v136 = vpop.f32.mrf.mxu0
    %v137 = vadd.f32 0.0, %v136
    %v138 = vpop.f32.mrf.mxu0
    %v139 = vadd.f32 0.0, %v138
    %140 = vmatprep.mubr.f32.mxu0 0.0
    %141 = vmatmul.mubr.f32.gmra.mxu0 %v16
    %v142 = vpop.f32.mrf.mxu0
    %v143 = vadd.f32 0.0, %v142
    %v144 = vpop.f32.mrf.mxu0
    %v145 = vadd.f32 0.0, %v144
    %146 = vmatprep.mubr.f32.mxu0 0.0
    %147 = vmatmul.mubr.f32.gmra.mxu0 %v17
    %v148 = vpop.f32.mrf.mxu0
    %v149 = vadd.f32 0.0, %v148
    %v150 = vpop.f32.mrf.mxu0
    %v151 = vadd.f32 0.0, %v150
    %152 = vmatprep.mubr.f32.mxu0 0.0
    %153 = vmatmul.mubr.f32.gmra.mxu0 %v18
    %v154 = vpop.f32.mrf.mxu0
    %v155 = vadd.f32 0.0, %v154
    %v156 = vpop.f32.mrf.mxu0
    %v157 = vadd.f32 0.0, %v156
    %158 = vmatprep.mubr.f32.mxu0 0.0
    %159 = vmatmul.mubr.f32.gmra.mxu0 %v19
    %v160 = vpop.f32.mrf.mxu0
    %v161 = vadd.f32 0.0, %v160
    %v162 = vpop.f32.mrf.mxu0
    %v163 = vadd.f32 0.0, %v162
    %164 = vdwg.mxu0
    %165 = vst [vmem:[#allocation2] sm:$0xff] %v119
    %166 = vst [vmem:[#allocation2 + $0x8] sm:$0xff] %v121
    %167 = vst [vmem:[#allocation2 + $0x10] sm:$0xff] %v125
    %168 = vst [vmem:[#allocation2 + $0x18] sm:$0xff] %v127
    %169 = vst [vmem:[#allocation2 + $0x20] sm:$0xff] %v131
    %170 = vst [vmem:[#allocation2 + $0x28] sm:$0xff] %v133
    %171 = vst [vmem:[#allocation2 + $0x30] sm:$0xff] %v137
    %172 = vst [vmem:[#allocation2 + $0x38] sm:$0xff] %v139
    %173 = vst [vmem:[#allocation2 + $0x40] sm:$0xff] %v143
    %174 = vst [vmem:[#allocation2 + $0x48] sm:$0xff] %v145
    %175 = vst [vmem:[#allocation2 + $0x50] sm:$0xff] %v149
    %176 = vst [vmem:[#allocation2 + $0x58] sm:$0xff] %v151
    %177 = vst [vmem:[#allocation2 + $0x60] sm:$0xff] %v155
    %178 = vst [vmem:[#allocation2 + $0x68] sm:$0xff] %v157
    %179 = vst [vmem:[#allocation2 + $0x70] sm:$0xff] %v161
    %180 = vst [vmem:[#allocation2 + $0x78] sm:$0xff] %v163
    // Predicated region
    $region10: #{lstm_model_forward.5} parent=1 // pred_check
      _
    $region11: #{lstm_model_forward.5} parent=1 // pred_check_branch
      %182 = sbr.rel (0) target = $region13
    $region12: #{lstm_model_forward.5} parent=1 // pred_region
      %s184 = ssub.s32 2048, 2048
      %185 = vsyncadd [#allocation3], %s184
      %s186 = sshll.u32 [#allocation2], 4
      %s187 = int_to_ptr.vmem [resolvable:$true] %s186
      %192 = dma.vmem_to_hbm [thread:$0]  %s187, 2048, %s2, [#allocation3], 256, 256, 16
    $region13: #{lstm_model_forward.5} parent=1 // pred_fallthru
      _
    // Predicated region
    $region14: #{lstm_model_forward.5} parent=1 // pred_check
      _
    $region15: #{lstm_model_forward.5} parent=1 // pred_check_branch
      %194 = sbr.rel (0) target = $region17
    $region16: #{lstm_model_forward.5} parent=1 // pred_region
      %195 = dma.done [#allocation3], 2048
    $region17: #{lstm_model_forward.5} parent=1 // pred_fallthru
      _
    %196 = vsyncpa [#allocation3], 1

// kernel: lstm_model_forward.3
$region0: #{lstm_model_forward.3}
  #allocation0 [shape = 'u32[]', space=smem, size = 0x4, offset = 0x4, fixed_abs, tag = 'smem constant byte address 0x4 - core index']
  #allocation1 [shape = 'u32[144,128]{1,0:T(1,128)}', space=vmem, size = 0x12000, scoped, tag = 'internal scratch']
  %s0 = inlined_call_operand.vmem [shape: f32[64,128], index: 0, kind: input, shape index: {}]
  %s1 = inlined_call_operand.vmem [shape: f32[128,512], index: 1, kind: input, shape index: {}]
  %s2 = inlined_call_operand.vmem [shape: f32[1,512], index: 2, kind: input, shape index: {}]
  %s3 = inlined_call_operand.vmem [shape: f32[64,512], index: 3, kind: output, shape index: {}]
  %s4 = sld [smem:[#allocation0]]
  $region22: #{lstm_model_forward.3} parent=0
    _
  %s6 = ssub.s32 1, %s4
  %s7 = scalar_select 0, %s6, %s4
  // Predicated region
  $region2: #{lstm_model_forward.3} parent=0 // pred_check
    _
  $region3: #{lstm_model_forward.3} parent=0 // pred_check_branch
    %9 = sbr.rel (0) target = $region5
  $region4: #{lstm_model_forward.3} parent=0 // pred_region
    _
  $region5: #{lstm_model_forward.3} parent=0 // pred_fallthru
    _
  // Predicated region
  $region6: #{lstm_model_forward.3} parent=0 // pred_check
    _
  $region7: #{lstm_model_forward.3} parent=0 // pred_check_branch
    %11 = sbr.rel (0) target = $region9
  $region8: #{lstm_model_forward.3} parent=0 // pred_region
    _
  $region9: #{lstm_model_forward.3} parent=0 // pred_fallthru
    _
  // Predicated region
  $region10: #{lstm_model_forward.3} parent=0 // pred_check
    _
  $region11: #{lstm_model_forward.3} parent=0 // pred_check_branch
    %13 = sbr.rel (0) target = $region13
  $region12: #{lstm_model_forward.3} parent=0 // pred_region
    _
  $region13: #{lstm_model_forward.3} parent=0 // pred_fallthru
    _
  %v14 = vld [vmem:[%s0] sm:$0xff]
  %v15 = vld [vmem:[%s0 + $0x8] sm:$0xff]
  %v16 = vld [vmem:[%s0 + $0x10] sm:$0xff]
  %v17 = vld [vmem:[%s0 + $0x18] sm:$0xff]
  %v18 = vld [vmem:[%s0 + $0x20] sm:$0xff]
  %v19 = vld [vmem:[%s0 + $0x28] sm:$0xff]
  %v20 = vld [vmem:[%s0 + $0x30] sm:$0xff]
  %v21 = vld [vmem:[%s0 + $0x38] sm:$0xff]
  %v22 = vld [vmem:[%s1] sm:$0xff]
  %v23 = vld [vmem:[%s1 + $0x8] sm:$0xff]
  %v24 = vld [vmem:[%s1 + $0x10] sm:$0xff]
  %v25 = vld [vmem:[%s1 + $0x18] sm:$0xff]
  %v26 = vld [vmem:[%s1 + $0x20] sm:$0xff]
  %v27 = vld [vmem:[%s1 + $0x28] sm:$0xff]
  %v28 = vld [vmem:[%s1 + $0x30] sm:$0xff]
  %v29 = vld [vmem:[%s1 + $0x38] sm:$0xff]
  %v30 = vld [vmem:[%s1 + $0x40] sm:$0xff]
  %v31 = vld [vmem:[%s1 + $0x48] sm:$0xff]
  %v32 = vld [vmem:[%s1 + $0x50] sm:$0xff]
  %v33 = vld [vmem:[%s1 + $0x58] sm:$0xff]
  %v34 = vld [vmem:[%s1 + $0x60] sm:$0xff]
  %v35 = vld [vmem:[%s1 + $0x68] sm:$0xff]
  %v36 = vld [vmem:[%s1 + $0x70] sm:$0xff]
  %v37 = vld [vmem:[%s1 + $0x78] sm:$0xff]
  %v38 = vld [vmem:[%s1 + $0x80] sm:$0xff]
  %v39 = vld [vmem:[%s1 + $0x88] sm:$0xff]
  %v40 = vld [vmem:[%s1 + $0x90] sm:$0xff]
  %v41 = vld [vmem:[%s1 + $0x98] sm:$0xff]
  %v42 = vld [vmem:[%s1 + $0xa0] sm:$0xff]
  %v43 = vld [vmem:[%s1 + $0xa8] sm:$0xff]
  %v44 = vld [vmem:[%s1 + $0xb0] sm:$0xff]
  %v45 = vld [vmem:[%s1 + $0xb8] sm:$0xff]
  %v46 = vld [vmem:[%s1 + $0xc0] sm:$0xff]
  %v47 = vld [vmem:[%s1 + $0xc8] sm:$0xff]
  %v48 = vld [vmem:[%s1 + $0xd0] sm:$0xff]
  %v49 = vld [vmem:[%s1 + $0xd8] sm:$0xff]
  %v50 = vld [vmem:[%s1 + $0xe0] sm:$0xff]
  %v51 = vld [vmem:[%s1 + $0xe8] sm:$0xff]
  %v52 = vld [vmem:[%s1 + $0xf0] sm:$0xff]
  %v53 = vld [vmem:[%s1 + $0xf8] sm:$0xff]
  %v54 = vld [vmem:[%s1 + $0x100] sm:$0xff]
  %v55 = vld [vmem:[%s1 + $0x108] sm:$0xff]
  %v56 = vld [vmem:[%s1 + $0x110] sm:$0xff]
  %v57 = vld [vmem:[%s1 + $0x118] sm:$0xff]
  %v58 = vld [vmem:[%s1 + $0x120] sm:$0xff]
  %v59 = vld [vmem:[%s1 + $0x128] sm:$0xff]
  %v60 = vld [vmem:[%s1 + $0x130] sm:$0xff]
  %v61 = vld [vmem:[%s1 + $0x138] sm:$0xff]
  %v62 = vld [vmem:[%s1 + $0x140] sm:$0xff]
  %v63 = vld [vmem:[%s1 + $0x148] sm:$0xff]
  %v64 = vld [vmem:[%s1 + $0x150] sm:$0xff]
  %v65 = vld [vmem:[%s1 + $0x158] sm:$0xff]
  %v66 = vld [vmem:[%s1 + $0x160] sm:$0xff]
  %v67 = vld [vmem:[%s1 + $0x168] sm:$0xff]
  %v68 = vld [vmem:[%s1 + $0x170] sm:$0xff]
  %v69 = vld [vmem:[%s1 + $0x178] sm:$0xff]
  %v70 = vld [vmem:[%s1 + $0x180] sm:$0xff]
  %v71 = vld [vmem:[%s1 + $0x188] sm:$0xff]
  %v72 = vld [vmem:[%s1 + $0x190] sm:$0xff]
  %v73 = vld [vmem:[%s1 + $0x198] sm:$0xff]
  %v74 = vld [vmem:[%s1 + $0x1a0] sm:$0xff]
  %v75 = vld [vmem:[%s1 + $0x1a8] sm:$0xff]
  %v76 = vld [vmem:[%s1 + $0x1b0] sm:$0xff]
  %v77 = vld [vmem:[%s1 + $0x1b8] sm:$0xff]
  %v78 = vld [vmem:[%s1 + $0x1c0] sm:$0xff]
  %v79 = vld [vmem:[%s1 + $0x1c8] sm:$0xff]
  %v80 = vld [vmem:[%s1 + $0x1d0] sm:$0xff]
  %v81 = vld [vmem:[%s1 + $0x1d8] sm:$0xff]
  %v82 = vld [vmem:[%s1 + $0x1e0] sm:$0xff]
  %v83 = vld [vmem:[%s1 + $0x1e8] sm:$0xff]
  %v84 = vld [vmem:[%s1 + $0x1f0] sm:$0xff]
  %v85 = vld [vmem:[%s1 + $0x1f8] sm:$0xff]
  %v86 = vld [vmem:[%s2] sm:$0xf]
  %v88 = vlaneseq
  %v89 = vshrl.u32 %v88, 7
  %v90 = vsub.s32 0, %v89
  %v91 = vrot.slane %v86, %v90
  %v92 = vlaneseq
  %v93 = vshrl.u32 %v92, 7
  %v94 = vsub.s32 1, %v93
  %v95 = vrot.slane %v86, %v94
  %v96 = vlaneseq
  %v97 = vshrl.u32 %v96, 7
  %v98 = vsub.s32 2, %v97
  %v99 = vrot.slane %v86, %v98
  %v100 = vlaneseq
  %v101 = vshrl.u32 %v100, 7
  %v102 = vsub.s32 3, %v101
  %v103 = vrot.slane %v86, %v102
  %108 = vmatprep.subr.mxu0 %v83
  %109 = vmatpush1.msra.mxu0 %v82
  %110 = vmatprep.subr.mxu0 %v79
  %111 = vmatpush1.msra.mxu0 %v78
  %112 = vmatprep.subr.mxu0 %v75
  %113 = vmatpush1.msra.mxu0 %v74
  %114 = vmatprep.subr.mxu0 %v71
  %115 = vmatpush1.msra.mxu0 %v70
  %116 = vmatprep.subr.mxu0 %v67
  %117 = vmatpush1.msra.mxu0 %v66
  %118 = vmatprep.subr.mxu0 %v63
  %119 = vmatpush1.msra.mxu0 %v62
  %120 = vmatprep.subr.mxu0 %v59
  %121 = vmatpush1.msra.mxu0 %v58
  %122 = vmatprep.subr.mxu0 %v55
  %123 = vmatpush1.msra.mxu0 %v54
  %124 = vmatprep.subr.mxu0 %v51
  %125 = vmatpush1.msra.mxu0 %v50
  %126 = vmatprep.subr.mxu0 %v47
  %127 = vmatpush1.msra.mxu0 %v46
  %128 = vmatprep.subr.mxu0 %v43
  %129 = vmatpush1.msra.mxu0 %v42
  %130 = vmatprep.subr.mxu0 %v39
  %131 = vmatpush1.msra.mxu0 %v38
  %132 = vmatprep.subr.mxu0 %v35
  %133 = vmatpush1.msra.mxu0 %v34
  %134 = vmatprep.subr.mxu0 %v31
  %135 = vmatpush1.msra.mxu0 %v30
  %136 = vmatprep.subr.mxu0 %v27
  %137 = vmatpush1.msra.mxu0 %v26
  %138 = vmatprep.subr.mxu0 %v23
  %139 = vmatpush1.msra.mxu0 %v22
  %140 = vmatprep.subr.mxu0 0.0
  %141 = vmatpush2.msra.mxu0 0.0
  %142 = vmatprep.subr.mxu0 0.0
  %143 = vmatpush2.msra.mxu0 0.0
  %144 = vmatprep.subr.mxu0 0.0
  %145 = vmatpush2.msra.mxu0 0.0
  %146 = vmatprep.subr.mxu0 0.0
  %147 = vmatpush2.msra.mxu0 0.0
  %148 = vmatprep.subr.mxu0 0.0
  %149 = vmatpush2.msra.mxu0 0.0
  %150 = vmatprep.subr.mxu0 0.0
  %151 = vmatpush2.msra.mxu0 0.0
  %152 = vmatprep.subr.mxu0 0.0
  %153 = vmatpush2.msra.mxu0 0.0
  %154 = vmatprep.subr.mxu0 0.0
  %155 = vmatpush2.msra.mxu0 0.0
  %156 = vmatprep.subr.mxu0 0.0
  %157 = vmatpush2.msra.mxu0 0.0
  %158 = vmatprep.subr.mxu0 0.0
  %159 = vmatpush2.msra.mxu0 0.0
  %160 = vmatprep.subr.mxu0 0.0
  %161 = vmatpush2.msra.mxu0 0.0
  %162 = vmatprep.subr.mxu0 0.0
  %163 = vmatpush2.msra.mxu0 0.0
  %164 = vmatprep.subr.mxu0 0.0
  %165 = vmatpush2.msra.mxu0 0.0
  %166 = vmatprep.subr.mxu0 0.0
  %167 = vmatpush2.msra.mxu0 0.0
  %168 = vmatprep.subr.mxu0 0.0
  %169 = vmatpush2.msra.mxu0 0.0
  %170 = vmatprep.subr.mxu0 0.0
  %171 = vmatpush2.msra.mxu0 0.0
  %172 = vmatprep.mubr.f32.mxu0 0.0
  %173 = vmatmul.mubr.f32.gmra.mxu0 %v14
  %v174 = vpop.f32.mrf.mxu0
  %v175 = vadd.f32 %v91, %v174
  %v176 = vpop.f32.mrf.mxu0
  %v177 = vadd.f32 %v95, %v176
  %178 = vmatprep.mubr.f32.mxu0 0.0
  %179 = vmatmul.mubr.f32.gmra.mxu0 %v15
  %v180 = vpop.f32.mrf.mxu0
  %v181 = vadd.f32 %v91, %v180
  %v182 = vpop.f32.mrf.mxu0
  %v183 = vadd.f32 %v95, %v182
  %184 = vmatprep.mubr.f32.mxu0 0.0
  %185 = vmatmul.mubr.f32.gmra.mxu0 %v16
  %v186 = vpop.f32.mrf.mxu0
  %v187 = vadd.f32 %v91, %v186
  %v188 = vpop.f32.mrf.mxu0
  %v189 = vadd.f32 %v95, %v188
  %190 = vmatprep.mubr.f32.mxu0 0.0
  %191 = vmatmul.mubr.f32.gmra.mxu0 %v17
  %v192 = vpop.f32.mrf.mxu0
  %v193 = vadd.f32 %v91, %v192
  %v194 = vpop.f32.mrf.mxu0
  %v195 = vadd.f32 %v95, %v194
  %196 = vmatprep.mubr.f32.mxu0 0.0
  %197 = vmatmul.mubr.f32.gmra.mxu0 %v18
  %v198 = vpop.f32.mrf.mxu0
  %v199 = vadd.f32 %v91, %v198
  %v200 = vpop.f32.mrf.mxu0
  %v201 = vadd.f32 %v95, %v200
  %202 = vmatprep.mubr.f32.mxu0 0.0
  %203 = vmatmul.mubr.f32.gmra.mxu0 %v19
  %v204 = vpop.f32.mrf.mxu0
  %v205 = vadd.f32 %v91, %v204
  %v206 = vpop.f32.mrf.mxu0
  %v207 = vadd.f32 %v95, %v206
  %208 = vmatprep.mubr.f32.mxu0 0.0
  %209 = vmatmul.mubr.f32.gmra.mxu0 %v20
  %v210 = vpop.f32.mrf.mxu0
  %v211 = vadd.f32 %v91, %v210
  %v212 = vpop.f32.mrf.mxu0
  %v213 = vadd.f32 %v95, %v212
  %214 = vmatprep.mubr.f32.mxu0 0.0
  %215 = vmatmul.mubr.f32.gmra.mxu0 %v21
  %v216 = vpop.f32.mrf.mxu0
  %v217 = vadd.f32 %v91, %v216
  %v218 = vpop.f32.mrf.mxu0
  %v219 = vadd.f32 %v95, %v218
  %220 = vdwg.mxu0
  %221 = vmatprep.subr.mxu0 %v85
  %222 = vmatpush1.msra.mxu0 %v84
  %223 = vmatprep.subr.mxu0 %v81
  %224 = vmatpush1.msra.mxu0 %v80
  %225 = vmatprep.subr.mxu0 %v77
  %226 = vmatpush1.msra.mxu0 %v76
  %227 = vmatprep.subr.mxu0 %v73
  %228 = vmatpush1.msra.mxu0 %v72
  %229 = vmatprep.subr.mxu0 %v69
  %230 = vmatpush1.msra.mxu0 %v68
  %231 = vmatprep.subr.mxu0 %v65
  %232 = vmatpush1.msra.mxu0 %v64
  %233 = vmatprep.subr.mxu0 %v61
  %234 = vmatpush1.msra.mxu0 %v60
  %235 = vmatprep.subr.mxu0 %v57
  %236 = vmatpush1.msra.mxu0 %v56
  %237 = vmatprep.subr.mxu0 %v53
  %238 = vmatpush1.msra.mxu0 %v52
  %239 = vmatprep.subr.mxu0 %v49
  %240 = vmatpush1.msra.mxu0 %v48
  %241 = vmatprep.subr.mxu0 %v45
  %242 = vmatpush1.msra.mxu0 %v44
  %243 = vmatprep.subr.mxu0 %v41
  %244 = vmatpush1.msra.mxu0 %v40
  %245 = vmatprep.subr.mxu0 %v37
  %246 = vmatpush1.msra.mxu0 %v36
  %247 = vmatprep.subr.mxu0 %v33
  %248 = vmatpush1.msra.mxu0 %v32
  %249 = vmatprep.subr.mxu0 %v29
  %250 = vmatpush1.msra.mxu0 %v28
  %251 = vmatprep.subr.mxu0 %v25
  %252 = vmatpush1.msra.mxu0 %v24
  %253 = vmatprep.subr.mxu0 0.0
  %254 = vmatpush2.msra.mxu0 0.0
  %255 = vmatprep.subr.mxu0 0.0
  %256 = vmatpush2.msra.mxu0 0.0
  %257 = vmatprep.subr.mxu0 0.0
  %258 = vmatpush2.msra.mxu0 0.0
  %259 = vmatprep.subr.mxu0 0.0
  %260 = vmatpush2.msra.mxu0 0.0
  %261 = vmatprep.subr.mxu0 0.0
  %262 = vmatpush2.msra.mxu0 0.0
  %263 = vmatprep.subr.mxu0 0.0
  %264 = vmatpush2.msra.mxu0 0.0
  %265 = vmatprep.subr.mxu0 0.0
  %266 = vmatpush2.msra.mxu0 0.0
  %267 = vmatprep.subr.mxu0 0.0
  %268 = vmatpush2.msra.mxu0 0.0
  %269 = vmatprep.subr.mxu0 0.0
  %270 = vmatpush2.msra.mxu0 0.0
  %271 = vmatprep.subr.mxu0 0.0
  %272 = vmatpush2.msra.mxu0 0.0
  %273 = vmatprep.subr.mxu0 0.0
  %274 = vmatpush2.msra.mxu0 0.0
  %275 = vmatprep.subr.mxu0 0.0
  %276 = vmatpush2.msra.mxu0 0.0
  %277 = vmatprep.subr.mxu0 0.0
  %278 = vmatpush2.msra.mxu0 0.0
  %279 = vmatprep.subr.mxu0 0.0
  %280 = vmatpush2.msra.mxu0 0.0
  %281 = vmatprep.subr.mxu0 0.0
  %282 = vmatpush2.msra.mxu0 0.0
  %283 = vmatprep.subr.mxu0 0.0
  %284 = vmatpush2.msra.mxu0 0.0
  %285 = vmatprep.mubr.f32.mxu0 0.0
  %286 = vmatmul.mubr.f32.gmra.mxu0 %v14
  %v287 = vpop.f32.mrf.mxu0
  %v288 = vadd.f32 %v99, %v287
  %v289 = vpop.f32.mrf.mxu0
  %v290 = vadd.f32 %v103, %v289
  %291 = vmatprep.mubr.f32.mxu0 0.0
  %292 = vmatmul.mubr.f32.gmra.mxu0 %v15
  %v293 = vpop.f32.mrf.mxu0
  %v294 = vadd.f32 %v99, %v293
  %v295 = vpop.f32.mrf.mxu0
  %v296 = vadd.f32 %v103, %v295
  %297 = vmatprep.mubr.f32.mxu0 0.0
  %298 = vmatmul.mubr.f32.gmra.mxu0 %v16
  %v299 = vpop.f32.mrf.mxu0
  %v300 = vadd.f32 %v99, %v299
  %v301 = vpop.f32.mrf.mxu0
  %v302 = vadd.f32 %v103, %v301
  %303 = vmatprep.mubr.f32.mxu0 0.0
  %304 = vmatmul.mubr.f32.gmra.mxu0 %v17
  %v305 = vpop.f32.mrf.mxu0
  %v306 = vadd.f32 %v99, %v305
  %v307 = vpop.f32.mrf.mxu0
  %v308 = vadd.f32 %v103, %v307
  %309 = vmatprep.mubr.f32.mxu0 0.0
  %310 = vmatmul.mubr.f32.gmra.mxu0 %v18
  %v311 = vpop.f32.mrf.mxu0
  %v312 = vadd.f32 %v99, %v311
  %v313 = vpop.f32.mrf.mxu0
  %v314 = vadd.f32 %v103, %v313
  %315 = vmatprep.mubr.f32.mxu0 0.0
  %316 = vmatmul.mubr.f32.gmra.mxu0 %v19
  %v317 = vpop.f32.mrf.mxu0
  %v318 = vadd.f32 %v99, %v317
  %v319 = vpop.f32.mrf.mxu0
  %v320 = vadd.f32 %v103, %v319
  %321 = vmatprep.mubr.f32.mxu0 0.0
  %322 = vmatmul.mubr.f32.gmra.mxu0 %v20
  %v323 = vpop.f32.mrf.mxu0
  %v324 = vadd.f32 %v99, %v323
  %v325 = vpop.f32.mrf.mxu0
  %v326 = vadd.f32 %v103, %v325
  %327 = vmatprep.mubr.f32.mxu0 0.0
  %328 = vmatmul.mubr.f32.gmra.mxu0 %v21
  %v329 = vpop.f32.mrf.mxu0
  %v330 = vadd.f32 %v99, %v329
  %v331 = vpop.f32.mrf.mxu0
  %v332 = vadd.f32 %v103, %v331
  %333 = vdwg.mxu0
  %334 = vst [vmem:[%s3] sm:$0xff] %v175
  %335 = vst [vmem:[%s3 + $0x8] sm:$0xff] %v177
  %336 = vst [vmem:[%s3 + $0x10] sm:$0xff] %v288
  %337 = vst [vmem:[%s3 + $0x18] sm:$0xff] %v290
  %338 = vst [vmem:[%s3 + $0x20] sm:$0xff] %v181
  %339 = vst [vmem:[%s3 + $0x28] sm:$0xff] %v183
  %340 = vst [vmem:[%s3 + $0x30] sm:$0xff] %v294
  %341 = vst [vmem:[%s3 + $0x38] sm:$0xff] %v296
  %342 = vst [vmem:[%s3 + $0x40] sm:$0xff] %v187
  %343 = vst [vmem:[%s3 + $0x48] sm:$0xff] %v189
  %344 = vst [vmem:[%s3 + $0x50] sm:$0xff] %v300
  %345 = vst [vmem:[%s3 + $0x58] sm:$0xff] %v302
  %346 = vst [vmem:[%s3 + $0x60] sm:$0xff] %v193
  %347 = vst [vmem:[%s3 + $0x68] sm:$0xff] %v195
  %348 = vst [vmem:[%s3 + $0x70] sm:$0xff] %v306
  %349 = vst [vmem:[%s3 + $0x78] sm:$0xff] %v308
  %350 = vst [vmem:[%s3 + $0x80] sm:$0xff] %v199
  %351 = vst [vmem:[%s3 + $0x88] sm:$0xff] %v201
  %352 = vst [vmem:[%s3 + $0x90] sm:$0xff] %v312
  %353 = vst [vmem:[%s3 + $0x98] sm:$0xff] %v314
  %354 = vst [vmem:[%s3 + $0xa0] sm:$0xff] %v205
  %355 = vst [vmem:[%s3 + $0xa8] sm:$0xff] %v207
  %356 = vst [vmem:[%s3 + $0xb0] sm:$0xff] %v318
  %357 = vst [vmem:[%s3 + $0xb8] sm:$0xff] %v320
  %358 = vst [vmem:[%s3 + $0xc0] sm:$0xff] %v211
  %359 = vst [vmem:[%s3 + $0xc8] sm:$0xff] %v213
  %360 = vst [vmem:[%s3 + $0xd0] sm:$0xff] %v324
  %361 = vst [vmem:[%s3 + $0xd8] sm:$0xff] %v326
  %362 = vst [vmem:[%s3 + $0xe0] sm:$0xff] %v217
  %363 = vst [vmem:[%s3 + $0xe8] sm:$0xff] %v219
  %364 = vst [vmem:[%s3 + $0xf0] sm:$0xff] %v330
  %365 = vst [vmem:[%s3 + $0xf8] sm:$0xff] %v332
  // Predicated region
  $region14: #{lstm_model_forward.3} parent=0 // pred_check
    _
  $region15: #{lstm_model_forward.3} parent=0 // pred_check_branch
    %367 = sbr.rel (0) target = $region17
  $region16: #{lstm_model_forward.3} parent=0 // pred_region
    _
  $region17: #{lstm_model_forward.3} parent=0 // pred_fallthru
    _
  // Predicated region
  $region18: #{lstm_model_forward.3} parent=0 // pred_check
    _
  $region19: #{lstm_model_forward.3} parent=0 // pred_check_branch
    %369 = sbr.rel (0) target = $region21
  $region20: #{lstm_model_forward.3} parent=0 // pred_region
    _
  $region21: #{lstm_model_forward.3} parent=0 // pred_fallthru
    _

// kernel: lstm_model_forward.4
$region0: #{lstm_model_forward.4}
  #allocation0 [shape = 'u32[]', space=smem, size = 0x4, offset = 0x4, fixed_abs, tag = 'smem constant byte address 0x4 - core index']
  #allocation1 [shape = 'u32[144,128]{1,0:T(1,128)}', space=vmem, size = 0x12000, scoped, tag = 'internal scratch']
  #allocation2 [shape = 'f32[8,128]{1,0:T(8,128)}', space=vmem, size = 0x1000, scoped, tag = 'scratch operand']
  #allocation3 [shape = 'f32[8,128]{1,0:T(8,128)}', space=vmem, size = 0x1000, scoped, tag = 'scratch operand']
  %s0 = inlined_call_operand.vmem [shape: f32[8,8,512], index: 0, kind: input, shape index: {}]
  %s1 = inlined_call_operand.vmem [shape: f32[128,512], index: 1, kind: input, shape index: {}]
  %s2 = inlined_call_operand.vmem [shape: f32[8,128], index: 2, kind: input, shape index: {}]
  %s3 = inlined_call_operand.vmem [shape: f32[8,128], index: 3, kind: input, shape index: {}]
  %s4 = inlined_call_operand.vmem [shape: f32[8,8,128], index: 4, kind: output, shape index: {0}]
  %s5 = inlined_call_operand.hbm [shape: f32[8,128], index: 5, kind: output, shape index: {1}]
  %s6 = inlined_call_operand.hbm [shape: f32[8,128], index: 6, kind: output, shape index: {2}]
  %7 = xla_tuple %s4, %s5, %s6
  %s8 = sld [smem:[#allocation0]]
  $region50: #{lstm_model_forward.4} parent=0
    _
  %s10 = ssub.s32 1, %s8
  %s11 = scalar_select 0, %s10, %s8
  $region1: #{lstm_model_forward.4} parent=0
    #allocation4 [shape = 'u8[4096]{0}', space=vmem, size = 0x1000, scoped, tag = 'output window, operand 1, single buffered']
    #allocation5 [shape = 's32[1]{0}', space=sflag, size = 0x4, scoped, tag = 'scoped memory for lstm_model_forward.4']
    #allocation6 [shape = 'u8[4096]{0}', space=vmem, size = 0x1000, scoped, tag = 'output window, operand 2, single buffered']
    #allocation7 [shape = 's32[1]{0}', space=sflag, size = 0x4, scoped, tag = 'scoped memory for lstm_model_forward.4']
    %12 = vsyncpa [#allocation5], 0
    %13 = vsyncpa [#allocation7], 0
    // Predicated region
    $region2: #{lstm_model_forward.4} parent=1 // pred_check
      _
    $region3: #{lstm_model_forward.4} parent=1 // pred_check_branch
      %15 = sbr.rel (0) target = $region5
    $region4: #{lstm_model_forward.4} parent=1 // pred_region
      _
    $region5: #{lstm_model_forward.4} parent=1 // pred_fallthru
      _
    // Predicated region
    $region6: #{lstm_model_forward.4} parent=1 // pred_check
      _
    $region7: #{lstm_model_forward.4} parent=1 // pred_check_branch
      %17 = sbr.rel (0) target = $region9
    $region8: #{lstm_model_forward.4} parent=1 // pred_region
      _
    $region9: #{lstm_model_forward.4} parent=1 // pred_fallthru
      _
    // Predicated region
    $region10: #{lstm_model_forward.4} parent=1 // pred_check
      _
    $region11: #{lstm_model_forward.4} parent=1 // pred_check_branch
      %19 = sbr.rel (0) target = $region13
    $region12: #{lstm_model_forward.4} parent=1 // pred_region
      _
    $region13: #{lstm_model_forward.4} parent=1 // pred_fallthru
      _
    // Predicated region
    $region14: #{lstm_model_forward.4} parent=1 // pred_check
      _
    $region15: #{lstm_model_forward.4} parent=1 // pred_check_branch
      %21 = sbr.rel (0) target = $region17
    $region16: #{lstm_model_forward.4} parent=1 // pred_region
      _
    $region17: #{lstm_model_forward.4} parent=1 // pred_fallthru
      _
    %p22 = scmp.eq.s32.totalorder 0, 0
    // Predicated region
    $region18: #{lstm_model_forward.4} parent=1 // pred_check
      %p23 = pneg %p22
    $region19: #{lstm_model_forward.4} parent=1 // pred_check_branch
      %25 = sbr.rel (%p23) target = $region21
    $region20: #{lstm_model_forward.4} parent=1 // pred_region
      %v26 = vld [vmem:[%s2] sm:$0xff]
      %27 = vst [vmem:[#allocation2] sm:$0xff] %v26
      %v28 = vld [vmem:[%s3] sm:$0xff]
      %29 = vst [vmem:[#allocation3] sm:$0xff] %v28
    $region21: #{lstm_model_forward.4} parent=1 // pred_fallthru
      _
    %v30 = vld [vmem:[%s1] sm:$0xff]
    %v31 = vld [vmem:[%s1 + $0x8] sm:$0xff]
    %v32 = vld [vmem:[%s1 + $0x10] sm:$0xff]
    %v33 = vld [vmem:[%s1 + $0x18] sm:$0xff]
    %v34 = vld [vmem:[%s1 + $0x20] sm:$0xff]
    %v35 = vld [vmem:[%s1 + $0x28] sm:$0xff]
    %v36 = vld [vmem:[%s1 + $0x30] sm:$0xff]
    %v37 = vld [vmem:[%s1 + $0x38] sm:$0xff]
    %v38 = vld [vmem:[%s1 + $0x40] sm:$0xff]
    %v39 = vld [vmem:[%s1 + $0x48] sm:$0xff]
    %v40 = vld [vmem:[%s1 + $0x50] sm:$0xff]
    %v41 = vld [vmem:[%s1 + $0x58] sm:$0xff]
    %v42 = vld [vmem:[%s1 + $0x60] sm:$0xff]
    %v43 = vld [vmem:[%s1 + $0x68] sm:$0xff]
    %v44 = vld [vmem:[%s1 + $0x70] sm:$0xff]
    %v45 = vld [vmem:[%s1 + $0x78] sm:$0xff]
    %v46 = vld [vmem:[%s1 + $0x80] sm:$0xff]
    %v47 = vld [vmem:[%s1 + $0x88] sm:$0xff]
    %v48 = vld [vmem:[%s1 + $0x90] sm:$0xff]
    %v49 = vld [vmem:[%s1 + $0x98] sm:$0xff]
    %v50 = vld [vmem:[%s1 + $0xa0] sm:$0xff]
    %v51 = vld [vmem:[%s1 + $0xa8] sm:$0xff]
    %v52 = vld [vmem:[%s1 + $0xb0] sm:$0xff]
    %v53 = vld [vmem:[%s1 + $0xb8] sm:$0xff]
    %v54 = vld [vmem:[%s1 + $0xc0] sm:$0xff]
    %v55 = vld [vmem:[%s1 + $0xc8] sm:$0xff]
    %v56 = vld [vmem:[%s1 + $0xd0] sm:$0xff]
    %v57 = vld [vmem:[%s1 + $0xd8] sm:$0xff]
    %v58 = vld [vmem:[%s1 + $0xe0] sm:$0xff]
    %v59 = vld [vmem:[%s1 + $0xe8] sm:$0xff]
    %v60 = vld [vmem:[%s1 + $0xf0] sm:$0xff]
    %v61 = vld [vmem:[%s1 + $0xf8] sm:$0xff]
    %v62 = vld [vmem:[%s1 + $0x100] sm:$0xff]
    %v63 = vld [vmem:[%s1 + $0x108] sm:$0xff]
    %v64 = vld [vmem:[%s1 + $0x110] sm:$0xff]
    %v65 = vld [vmem:[%s1 + $0x118] sm:$0xff]
    %v66 = vld [vmem:[%s1 + $0x120] sm:$0xff]
    %v67 = vld [vmem:[%s1 + $0x128] sm:$0xff]
    %v68 = vld [vmem:[%s1 + $0x130] sm:$0xff]
    %v69 = vld [vmem:[%s1 + $0x138] sm:$0xff]
    %v70 = vld [vmem:[%s1 + $0x140] sm:$0xff]
    %v71 = vld [vmem:[%s1 + $0x148] sm:$0xff]
    %v72 = vld [vmem:[%s1 + $0x150] sm:$0xff]
    %v73 = vld [vmem:[%s1 + $0x158] sm:$0xff]
    %v74 = vld [vmem:[%s1 + $0x160] sm:$0xff]
    %v75 = vld [vmem:[%s1 + $0x168] sm:$0xff]
    %v76 = vld [vmem:[%s1 + $0x170] sm:$0xff]
    %v77 = vld [vmem:[%s1 + $0x178] sm:$0xff]
    %v78 = vld [vmem:[%s1 + $0x180] sm:$0xff]
    %v79 = vld [vmem:[%s1 + $0x188] sm:$0xff]
    %v80 = vld [vmem:[%s1 + $0x190] sm:$0xff]
    %v81 = vld [vmem:[%s1 + $0x198] sm:$0xff]
    %v82 = vld [vmem:[%s1 + $0x1a0] sm:$0xff]
    %v83 = vld [vmem:[%s1 + $0x1a8] sm:$0xff]
    %v84 = vld [vmem:[%s1 + $0x1b0] sm:$0xff]
    %v85 = vld [vmem:[%s1 + $0x1b8] sm:$0xff]
    %v86 = vld [vmem:[%s1 + $0x1c0] sm:$0xff]
    %v87 = vld [vmem:[%s1 + $0x1c8] sm:$0xff]
    %v88 = vld [vmem:[%s1 + $0x1d0] sm:$0xff]
    %v89 = vld [vmem:[%s1 + $0x1d8] sm:$0xff]
    %v90 = vld [vmem:[%s1 + $0x1e0] sm:$0xff]
    %v91 = vld [vmem:[%s1 + $0x1e8] sm:$0xff]
    %v92 = vld [vmem:[%s1 + $0x1f0] sm:$0xff]
    %v93 = vld [vmem:[%s1 + $0x1f8] sm:$0xff]
    %v94 = vld [vmem:[#allocation2] sm:$0xff]
    %v95 = vld [vmem:[#allocation3] sm:$0xff]
    %v96 = vld [vmem:[%s0] sm:$0xff]
    %v97 = vld [vmem:[%s0 + $0x8] sm:$0xff]
    %v98 = vld [vmem:[%s0 + $0x10] sm:$0xff]
    %v99 = vld [vmem:[%s0 + $0x18] sm:$0xff]
    %100 = vmatprep.subr.mxu0 %v91
    %101 = vmatpush1.msra.mxu0 %v90
    %102 = vmatprep.subr.mxu0 %v87
    %103 = vmatpush1.msra.mxu0 %v86
    %104 = vmatprep.subr.mxu0 %v83
    %105 = vmatpush1.msra.mxu0 %v82
    %106 = vmatprep.subr.mxu0 %v79
    %107 = vmatpush1.msra.mxu0 %v78
    %108 = vmatprep.subr.mxu0 %v75
    %109 = vmatpush1.msra.mxu0 %v74
    %110 = vmatprep.subr.mxu0 %v71
    %111 = vmatpush1.msra.mxu0 %v70
    %112 = vmatprep.subr.mxu0 %v67
    %113 = vmatpush1.msra.mxu0 %v66
    %114 = vmatprep.subr.mxu0 %v63
    %115 = vmatpush1.msra.mxu0 %v62
    %116 = vmatprep.subr.mxu0 %v59
    %117 = vmatpush1.msra.mxu0 %v58
    %118 = vmatprep.subr.mxu0 %v55
    %119 = vmatpush1.msra.mxu0 %v54
    %120 = vmatprep.subr.mxu0 %v51
    %121 = vmatpush1.msra.mxu0 %v50
    %122 = vmatprep.subr.mxu0 %v47
    %123 = vmatpush1.msra.mxu0 %v46
    %124 = vmatprep.subr.mxu0 %v43
    %125 = vmatpush1.msra.mxu0 %v42
    %126 = vmatprep.subr.mxu0 %v39
    %127 = vmatpush1.msra.mxu0 %v38
    %128 = vmatprep.subr.mxu0 %v35
    %129 = vmatpush1.msra.mxu0 %v34
    %130 = vmatprep.subr.mxu0 %v31
    %131 = vmatpush1.msra.mxu0 %v30
    %132 = vmatprep.subr.mxu0 0.0
    %133 = vmatpush2.msra.mxu0 0.0
    %134 = vmatprep.subr.mxu0 0.0
    %135 = vmatpush2.msra.mxu0 0.0
    %136 = vmatprep.subr.mxu0 0.0
    %137 = vmatpush2.msra.mxu0 0.0
    %138 = vmatprep.subr.mxu0 0.0
    %139 = vmatpush2.msra.mxu0 0.0
    %140 = vmatprep.subr.mxu0 0.0
    %141 = vmatpush2.msra.mxu0 0.0
    %142 = vmatprep.subr.mxu0 0.0
    %143 = vmatpush2.msra.mxu0 0.0
    %144 = vmatprep.subr.mxu0 0.0
    %145 = vmatpush2.msra.mxu0 0.0
    %146 = vmatprep.subr.mxu0 0.0
    %147 = vmatpush2.msra.mxu0 0.0
    %148 = vmatprep.subr.mxu0 0.0
    %149 = vmatpush2.msra.mxu0 0.0
    %150 = vmatprep.subr.mxu0 0.0
    %151 = vmatpush2.msra.mxu0 0.0
    %152 = vmatprep.subr.mxu0 0.0
    %153 = vmatpush2.msra.mxu0 0.0
    %154 = vmatprep.subr.mxu0 0.0
    %155 = vmatpush2.msra.mxu0 0.0
    %156 = vmatprep.subr.mxu0 0.0
    %157 = vmatpush2.msra.mxu0 0.0
    %158 = vmatprep.subr.mxu0 0.0
    %159 = vmatpush2.msra.mxu0 0.0
    %160 = vmatprep.subr.mxu0 0.0
    %161 = vmatpush2.msra.mxu0 0.0
    %162 = vmatprep.subr.mxu0 0.0
    %163 = vmatpush2.msra.mxu0 0.0
    %164 = vmatprep.mubr.f32.mxu0 0.0
    %165 = vmatmul.mubr.f32.gmra.mxu0 %v94
    %v166 = vpop.f32.mrf.mxu0
    %v167 = vadd.f32 0.0, %v166
    %v168 = vpop.f32.mrf.mxu0
    %v169 = vadd.f32 0.0, %v168
    %170 = vdwg.mxu0
    %171 = vmatprep.subr.mxu0 %v93
    %172 = vmatpush1.msra.mxu0 %v92
    %173 = vmatprep.subr.mxu0 %v89
    %174 = vmatpush1.msra.mxu0 %v88
    %175 = vmatprep.subr.mxu0 %v85
    %176 = vmatpush1.msra.mxu0 %v84
    %177 = vmatprep.subr.mxu0 %v81
    %178 = vmatpush1.msra.mxu0 %v80
    %179 = vmatprep.subr.mxu0 %v77
    %180 = vmatpush1.msra.mxu0 %v76
    %181 = vmatprep.subr.mxu0 %v73
    %182 = vmatpush1.msra.mxu0 %v72
    %183 = vmatprep.subr.mxu0 %v69
    %184 = vmatpush1.msra.mxu0 %v68
    %185 = vmatprep.subr.mxu0 %v65
    %186 = vmatpush1.msra.mxu0 %v64
    %187 = vmatprep.subr.mxu0 %v61
    %188 = vmatpush1.msra.mxu0 %v60
    %189 = vmatprep.subr.mxu0 %v57
    %190 = vmatpush1.msra.mxu0 %v56
    %191 = vmatprep.subr.mxu0 %v53
    %192 = vmatpush1.msra.mxu0 %v52
    %193 = vmatprep.subr.mxu0 %v49
    %194 = vmatpush1.msra.mxu0 %v48
    %195 = vmatprep.subr.mxu0 %v45
    %196 = vmatpush1.msra.mxu0 %v44
    %197 = vmatprep.subr.mxu0 %v41
    %198 = vmatpush1.msra.mxu0 %v40
    %199 = vmatprep.subr.mxu0 %v37
    %200 = vmatpush1.msra.mxu0 %v36
    %201 = vmatprep.subr.mxu0 %v33
    %202 = vmatpush1.msra.mxu0 %v32
    %203 = vmatprep.subr.mxu0 0.0
    %204 = vmatpush2.msra.mxu0 0.0
    %205 = vmatprep.subr.mxu0 0.0
    %206 = vmatpush2.msra.mxu0 0.0
    %207 = vmatprep.subr.mxu0 0.0
    %208 = vmatpush2.msra.mxu0 0.0
    %209 = vmatprep.subr.mxu0 0.0
    %210 = vmatpush2.msra.mxu0 0.0
    %211 = vmatprep.subr.mxu0 0.0
    %212 = vmatpush2.msra.mxu0 0.0
    %213 = vmatprep.subr.mxu0 0.0
    %214 = vmatpush2.msra.mxu0 0.0
    %215 = vmatprep.subr.mxu0 0.0
    %216 = vmatpush2.msra.mxu0 0.0
    %217 = vmatprep.subr.mxu0 0.0
    %218 = vmatpush2.msra.mxu0 0.0
    %219 = vmatprep.subr.mxu0 0.0
    %220 = vmatpush2.msra.mxu0 0.0
    %221 = vmatprep.subr.mxu0 0.0
    %222 = vmatpush2.msra.mxu0 0.0
    %223 = vmatprep.subr.mxu0 0.0
    %224 = vmatpush2.msra.mxu0 0.0
    %225 = vmatprep.subr.mxu0 0.0
    %226 = vmatpush2.msra.mxu0 0.0
    %227 = vmatprep.subr.mxu0 0.0
    %228 = vmatpush2.msra.mxu0 0.0
    %229 = vmatprep.subr.mxu0 0.0
    %230 = vmatpush2.msra.mxu0 0.0
    %231 = vmatprep.subr.mxu0 0.0
    %232 = vmatpush2.msra.mxu0 0.0
    %233 = vmatprep.subr.mxu0 0.0
    %234 = vmatpush2.msra.mxu0 0.0
    %235 = vmatprep.mubr.f32.mxu0 0.0
    %236 = vmatmul.mubr.f32.gmra.mxu0 %v94
    %v237 = vpop.f32.mrf.mxu0
    %v238 = vadd.f32 0.0, %v237
    %v239 = vpop.f32.mrf.mxu0
    %v240 = vadd.f32 0.0, %v239
    %241 = vdwg.mxu0
    %v242 = vadd.f32 %v96, %v167
    %v243 = vadd.f32 %v97, %v169
    %v244 = vadd.f32 %v98, %v238
    %v245 = vadd.f32 %v99, %v240
    %v246 = vxor.u32 %v242, 2147483648
    %v247 = vmul.f32 %v246, 1.442695
    %v248 = vpow.pop %v247
    %v249 = vadd.f32 %v248, 1.0
    %v250 = vrcp.pop %v249
    %v251 = vmul.f32 1.0, %v250
    %v252 = vxor.u32 %v243, 2147483648
    %v253 = vmul.f32 %v252, 1.442695
    %v254 = vpow.pop %v253
    %v255 = vadd.f32 %v254, 1.0
    %v256 = vrcp.pop %v255
    %v257 = vmul.f32 1.0, %v256
    %v258 = vtanh.pop %v244
    %v259 = vxor.u32 %v245, 2147483648
    %v260 = vmul.f32 %v259, 1.442695
    %v261 = vpow.pop %v260
    %v262 = vadd.f32 %v261, 1.0
    %v263 = vrcp.pop %v262
    %v264 = vmul.f32 1.0, %v263
    %v265 = vmul.f32 %v257, %v95
    %v266 = vmul.f32 %v251, %v258
    %v267 = vadd.f32 %v265, %v266
    %v268 = vtanh.pop %v267
    %v269 = vmul.f32 %v264, %v268
    %270 = vst [vmem:[%s4] sm:$0xff] %v269
    %s271 = scalar_lea.vmem %s0, 32
    %v272 = vld [vmem:[%s271] sm:$0xff]
    %v273 = vld [vmem:[%s271 + $0x8] sm:$0xff]
    %v274 = vld [vmem:[%s271 + $0x10] sm:$0xff]
    %v275 = vld [vmem:[%s271 + $0x18] sm:$0xff]
    %276 = vmatprep.subr.mxu0 %v91
    %277 = vmatpush1.msra.mxu0 %v90
    %278 = vmatprep.subr.mxu0 %v87
    %279 = vmatpush1.msra.mxu0 %v86
    %280 = vmatprep.subr.mxu0 %v83
    %281 = vmatpush1.msra.mxu0 %v82
    %282 = vmatprep.subr.mxu0 %v79
    %283 = vmatpush1.msra.mxu0 %v78
    %284 = vmatprep.subr.mxu0 %v75
    %285 = vmatpush1.msra.mxu0 %v74
    %286 = vmatprep.subr.mxu0 %v71
    %287 = vmatpush1.msra.mxu0 %v70
    %288 = vmatprep.subr.mxu0 %v67
    %289 = vmatpush1.msra.mxu0 %v66
    %290 = vmatprep.subr.mxu0 %v63
    %291 = vmatpush1.msra.mxu0 %v62
    %292 = vmatprep.subr.mxu0 %v59
    %293 = vmatpush1.msra.mxu0 %v58
    %294 = vmatprep.subr.mxu0 %v55
    %295 = vmatpush1.msra.mxu0 %v54
    %296 = vmatprep.subr.mxu0 %v51
    %297 = vmatpush1.msra.mxu0 %v50
    %298 = vmatprep.subr.mxu0 %v47
    %299 = vmatpush1.msra.mxu0 %v46
    %300 = vmatprep.subr.mxu0 %v43
    %301 = vmatpush1.msra.mxu0 %v42
    %302 = vmatprep.subr.mxu0 %v39
    %303 = vmatpush1.msra.mxu0 %v38
    %304 = vmatprep.subr.mxu0 %v35
    %305 = vmatpush1.msra.mxu0 %v34
    %306 = vmatprep.subr.mxu0 %v31
    %307 = vmatpush1.msra.mxu0 %v30
    %308 = vmatprep.subr.mxu0 0.0
    %309 = vmatpush2.msra.mxu0 0.0
    %310 = vmatprep.subr.mxu0 0.0
    %311 = vmatpush2.msra.mxu0 0.0
    %312 = vmatprep.subr.mxu0 0.0
    %313 = vmatpush2.msra.mxu0 0.0
    %314 = vmatprep.subr.mxu0 0.0
    %315 = vmatpush2.msra.mxu0 0.0
    %316 = vmatprep.subr.mxu0 0.0
    %317 = vmatpush2.msra.mxu0 0.0
    %318 = vmatprep.subr.mxu0 0.0
    %319 = vmatpush2.msra.mxu0 0.0
    %320 = vmatprep.subr.mxu0 0.0
    %321 = vmatpush2.msra.mxu0 0.0
    %322 = vmatprep.subr.mxu0 0.0
    %323 = vmatpush2.msra.mxu0 0.0
    %324 = vmatprep.subr.mxu0 0.0
    %325 = vmatpush2.msra.mxu0 0.0
    %326 = vmatprep.subr.mxu0 0.0
    %327 = vmatpush2.msra.mxu0 0.0
    %328 = vmatprep.subr.mxu0 0.0
    %329 = vmatpush2.msra.mxu0 0.0
    %330 = vmatprep.subr.mxu0 0.0
    %331 = vmatpush2.msra.mxu0 0.0
    %332 = vmatprep.subr.mxu0 0.0
    %333 = vmatpush2.msra.mxu0 0.0
    %334 = vmatprep.subr.mxu0 0.0
    %335 = vmatpush2.msra.mxu0 0.0
    %336 = vmatprep.subr.mxu0 0.0
    %337 = vmatpush2.msra.mxu0 0.0
    %338 = vmatprep.subr.mxu0 0.0
    %339 = vmatpush2.msra.mxu0 0.0
    %340 = vmatprep.mubr.f32.mxu0 0.0
    %341 = vmatmul.mubr.f32.gmra.mxu0 %v269
    %v342 = vpop.f32.mrf.mxu0
    %v343 = vadd.f32 0.0, %v342
    %v344 = vpop.f32.mrf.mxu0
    %v345 = vadd.f32 0.0, %v344
    %346 = vdwg.mxu0
    %347 = vmatprep.subr.mxu0 %v93
    %348 = vmatpush1.msra.mxu0 %v92
    %349 = vmatprep.subr.mxu0 %v89
    %350 = vmatpush1.msra.mxu0 %v88
    %351 = vmatprep.subr.mxu0 %v85
    %352 = vmatpush1.msra.mxu0 %v84
    %353 = vmatprep.subr.mxu0 %v81
    %354 = vmatpush1.msra.mxu0 %v80
    %355 = vmatprep.subr.mxu0 %v77
    %356 = vmatpush1.msra.mxu0 %v76
    %357 = vmatprep.subr.mxu0 %v73
    %358 = vmatpush1.msra.mxu0 %v72
    %359 = vmatprep.subr.mxu0 %v69
    %360 = vmatpush1.msra.mxu0 %v68
    %361 = vmatprep.subr.mxu0 %v65
    %362 = vmatpush1.msra.mxu0 %v64
    %363 = vmatprep.subr.mxu0 %v61
    %364 = vmatpush1.msra.mxu0 %v60
    %365 = vmatprep.subr.mxu0 %v57
    %366 = vmatpush1.msra.mxu0 %v56
    %367 = vmatprep.subr.mxu0 %v53
    %368 = vmatpush1.msra.mxu0 %v52
    %369 = vmatprep.subr.mxu0 %v49
    %370 = vmatpush1.msra.mxu0 %v48
    %371 = vmatprep.subr.mxu0 %v45
    %372 = vmatpush1.msra.mxu0 %v44
    %373 = vmatprep.subr.mxu0 %v41
    %374 = vmatpush1.msra.mxu0 %v40
    %375 = vmatprep.subr.mxu0 %v37
    %376 = vmatpush1.msra.mxu0 %v36
    %377 = vmatprep.subr.mxu0 %v33
    %378 = vmatpush1.msra.mxu0 %v32
    %379 = vmatprep.subr.mxu0 0.0
    %380 = vmatpush2.msra.mxu0 0.0
    %381 = vmatprep.subr.mxu0 0.0
    %382 = vmatpush2.msra.mxu0 0.0
    %383 = vmatprep.subr.mxu0 0.0
    %384 = vmatpush2.msra.mxu0 0.0
    %385 = vmatprep.subr.mxu0 0.0
    %386 = vmatpush2.msra.mxu0 0.0
    %387 = vmatprep.subr.mxu0 0.0
    %388 = vmatpush2.msra.mxu0 0.0
    %389 = vmatprep.subr.mxu0 0.0
    %390 = vmatpush2.msra.mxu0 0.0
    %391 = vmatprep.subr.mxu0 0.0
    %392 = vmatpush2.msra.mxu0 0.0
    %393 = vmatprep.subr.mxu0 0.0
    %394 = vmatpush2.msra.mxu0 0.0
    %395 = vmatprep.subr.mxu0 0.0
    %396 = vmatpush2.msra.mxu0 0.0
    %397 = vmatprep.subr.mxu0 0.0
    %398 = vmatpush2.msra.mxu0 0.0
    %399 = vmatprep.subr.mxu0 0.0
    %400 = vmatpush2.msra.mxu0 0.0
    %401 = vmatprep.subr.mxu0 0.0
    %402 = vmatpush2.msra.mxu0 0.0
    %403 = vmatprep.subr.mxu0 0.0
    %404 = vmatpush2.msra.mxu0 0.0
    %405 = vmatprep.subr.mxu0 0.0
    %406 = vmatpush2.msra.mxu0 0.0
    %407 = vmatprep.subr.mxu0 0.0
    %408 = vmatpush2.msra.mxu0 0.0
    %409 = vmatprep.subr.mxu0 0.0
    %410 = vmatpush2.msra.mxu0 0.0
    %411 = vmatprep.mubr.f32.mxu0 0.0
    %412 = vmatmul.mubr.f32.gmra.mxu0 %v269
    %v413 = vpop.f32.mrf.mxu0
    %v414 = vadd.f32 0.0, %v413
    %v415 = vpop.f32.mrf.mxu0
    %v416 = vadd.f32 0.0, %v415
    %417 = vdwg.mxu0
    %v418 = vadd.f32 %v272, %v343
    %v419 = vadd.f32 %v273, %v345
    %v420 = vadd.f32 %v274, %v414
    %v421 = vadd.f32 %v275, %v416
    %v422 = vxor.u32 %v418, 2147483648
    %v423 = vmul.f32 %v422, 1.442695
    %v424 = vpow.pop %v423
    %v425 = vadd.f32 %v424, 1.0
    %v426 = vrcp.pop %v425
    %v427 = vmul.f32 1.0, %v426
    %v428 = vxor.u32 %v419, 2147483648
    %v429 = vmul.f32 %v428, 1.442695
    %v430 = vpow.pop %v429
    %v431 = vadd.f32 %v430, 1.0
    %v432 = vrcp.pop %v431
    %v433 = vmul.f32 1.0, %v432
    %v434 = vtanh.pop %v420
    %v435 = vxor.u32 %v421, 2147483648
    %v436 = vmul.f32 %v435, 1.442695
    %v437 = vpow.pop %v436
    %v438 = vadd.f32 %v437, 1.0
    %v439 = vrcp.pop %v438
    %v440 = vmul.f32 1.0, %v439
    %v441 = vmul.f32 %v433, %v267
    %v442 = vmul.f32 %v427, %v434
    %v443 = vadd.f32 %v441, %v442
    %v444 = vtanh.pop %v443
    %v445 = vmul.f32 %v440, %v444
    %s446 = scalar_lea.vmem %s4, 8
    %447 = vst [vmem:[%s446] sm:$0xff] %v445
    %s448 = scalar_lea.vmem %s0, 64
    %v449 = vld [vmem:[%s448] sm:$0xff]
    %v450 = vld [vmem:[%s448 + $0x8] sm:$0xff]
    %v451 = vld [vmem:[%s448 + $0x10] sm:$0xff]
    %v452 = vld [vmem:[%s448 + $0x18] sm:$0xff]
    %453 = vmatprep.subr.mxu0 %v91
    %454 = vmatpush1.msra.mxu0 %v90
    %455 = vmatprep.subr.mxu0 %v87
    %456 = vmatpush1.msra.mxu0 %v86
    %457 = vmatprep.subr.mxu0 %v83
    %458 = vmatpush1.msra.mxu0 %v82
    %459 = vmatprep.subr.mxu0 %v79
    %460 = vmatpush1.msra.mxu0 %v78
    %461 = vmatprep.subr.mxu0 %v75
    %462 = vmatpush1.msra.mxu0 %v74
    %463 = vmatprep.subr.mxu0 %v71
    %464 = vmatpush1.msra.mxu0 %v70
    %465 = vmatprep.subr.mxu0 %v67
    %466 = vmatpush1.msra.mxu0 %v66
    %467 = vmatprep.subr.mxu0 %v63
    %468 = vmatpush1.msra.mxu0 %v62
    %469 = vmatprep.subr.mxu0 %v59
    %470 = vmatpush1.msra.mxu0 %v58
    %471 = vmatprep.subr.mxu0 %v55
    %472 = vmatpush1.msra.mxu0 %v54
    %473 = vmatprep.subr.mxu0 %v51
    %474 = vmatpush1.msra.mxu0 %v50
    %475 = vmatprep.subr.mxu0 %v47
    %476 = vmatpush1.msra.mxu0 %v46
    %477 = vmatprep.subr.mxu0 %v43
    %478 = vmatpush1.msra.mxu0 %v42
    %479 = vmatprep.subr.mxu0 %v39
    %480 = vmatpush1.msra.mxu0 %v38
    %481 = vmatprep.subr.mxu0 %v35
    %482 = vmatpush1.msra.mxu0 %v34
    %483 = vmatprep.subr.mxu0 %v31
    %484 = vmatpush1.msra.mxu0 %v30
    %485 = vmatprep.subr.mxu0 0.0
    %486 = vmatpush2.msra.mxu0 0.0
    %487 = vmatprep.subr.mxu0 0.0
    %488 = vmatpush2.msra.mxu0 0.0
    %489 = vmatprep.subr.mxu0 0.0
    %490 = vmatpush2.msra.mxu0 0.0
    %491 = vmatprep.subr.mxu0 0.0
    %492 = vmatpush2.msra.mxu0 0.0
    %493 = vmatprep.subr.mxu0 0.0
    %494 = vmatpush2.msra.mxu0 0.0
    %495 = vmatprep.subr.mxu0 0.0
    %496 = vmatpush2.msra.mxu0 0.0
    %497 = vmatprep.subr.mxu0 0.0
    %498 = vmatpush2.msra.mxu0 0.0
    %499 = vmatprep.subr.mxu0 0.0
    %500 = vmatpush2.msra.mxu0 0.0
    %501 = vmatprep.subr.mxu0 0.0
    %502 = vmatpush2.msra.mxu0 0.0
    %503 = vmatprep.subr.mxu0 0.0
    %504 = vmatpush2.msra.mxu0 0.0
    %505 = vmatprep.subr.mxu0 0.0
    %506 = vmatpush2.msra.mxu0 0.0
    %507 = vmatprep.subr.mxu0 0.0
    %508 = vmatpush2.msra.mxu0 0.0
    %509 = vmatprep.subr.mxu0 0.0
    %510 = vmatpush2.msra.mxu0 0.0
    %511 = vmatprep.subr.mxu0 0.0
    %512 = vmatpush2.msra.mxu0 0.0
    %513 = vmatprep.subr.mxu0 0.0
    %514 = vmatpush2.msra.mxu0 0.0
    %515 = vmatprep.subr.mxu0 0.0
    %516 = vmatpush2.msra.mxu0 0.0
    %517 = vmatprep.mubr.f32.mxu0 0.0
    %518 = vmatmul.mubr.f32.gmra.mxu0 %v445
    %v519 = vpop.f32.mrf.mxu0
    %v520 = vadd.f32 0.0, %v519
    %v521 = vpop.f32.mrf.mxu0
    %v522 = vadd.f32 0.0, %v521
    %523 = vdwg.mxu0
    %524 = vmatprep.subr.mxu0 %v93
    %525 = vmatpush1.msra.mxu0 %v92
    %526 = vmatprep.subr.mxu0 %v89
    %527 = vmatpush1.msra.mxu0 %v88
    %528 = vmatprep.subr.mxu0 %v85
    %529 = vmatpush1.msra.mxu0 %v84
    %530 = vmatprep.subr.mxu0 %v81
    %531 = vmatpush1.msra.mxu0 %v80
    %532 = vmatprep.subr.mxu0 %v77
    %533 = vmatpush1.msra.mxu0 %v76
    %534 = vmatprep.subr.mxu0 %v73
    %535 = vmatpush1.msra.mxu0 %v72
    %536 = vmatprep.subr.mxu0 %v69
    %537 = vmatpush1.msra.mxu0 %v68
    %538 = vmatprep.subr.mxu0 %v65
    %539 = vmatpush1.msra.mxu0 %v64
    %540 = vmatprep.subr.mxu0 %v61
    %541 = vmatpush1.msra.mxu0 %v60
    %542 = vmatprep.subr.mxu0 %v57
    %543 = vmatpush1.msra.mxu0 %v56
    %544 = vmatprep.subr.mxu0 %v53
    %545 = vmatpush1.msra.mxu0 %v52
    %546 = vmatprep.subr.mxu0 %v49
    %547 = vmatpush1.msra.mxu0 %v48
    %548 = vmatprep.subr.mxu0 %v45
    %549 = vmatpush1.msra.mxu0 %v44
    %550 = vmatprep.subr.mxu0 %v41
    %551 = vmatpush1.msra.mxu0 %v40
    %552 = vmatprep.subr.mxu0 %v37
    %553 = vmatpush1.msra.mxu0 %v36
    %554 = vmatprep.subr.mxu0 %v33
    %555 = vmatpush1.msra.mxu0 %v32
    %556 = vmatprep.subr.mxu0 0.0
    %557 = vmatpush2.msra.mxu0 0.0
    %558 = vmatprep.subr.mxu0 0.0
    %559 = vmatpush2.msra.mxu0 0.0
    %560 = vmatprep.subr.mxu0 0.0
    %561 = vmatpush2.msra.mxu0 0.0
    %562 = vmatprep.subr.mxu0 0.0
    %563 = vmatpush2.msra.mxu0 0.0
    %564 = vmatprep.subr.mxu0 0.0
    %565 = vmatpush2.msra.mxu0 0.0
    %566 = vmatprep.subr.mxu0 0.0
    %567 = vmatpush2.msra.mxu0 0.0
    %568 = vmatprep.subr.mxu0 0.0
    %569 = vmatpush2.msra.mxu0 0.0
    %570 = vmatprep.subr.mxu0 0.0
    %571 = vmatpush2.msra.mxu0 0.0
    %572 = vmatprep.subr.mxu0 0.0
    %573 = vmatpush2.msra.mxu0 0.0
    %574 = vmatprep.subr.mxu0 0.0
    %575 = vmatpush2.msra.mxu0 0.0
    %576 = vmatprep.subr.mxu0 0.0
    %577 = vmatpush2.msra.mxu0 0.0
    %578 = vmatprep.subr.mxu0 0.0
    %579 = vmatpush2.msra.mxu0 0.0
    %580 = vmatprep.subr.mxu0 0.0
    %581 = vmatpush2.msra.mxu0 0.0
    %582 = vmatprep.subr.mxu0 0.0
    %583 = vmatpush2.msra.mxu0 0.0
    %584 = vmatprep.subr.mxu0 0.0
    %585 = vmatpush2.msra.mxu0 0.0
    %586 = vmatprep.subr.mxu0 0.0
    %587 = vmatpush2.msra.mxu0 0.0
    %588 = vmatprep.mubr.f32.mxu0 0.0
    %589 = vmatmul.mubr.f32.gmra.mxu0 %v445
    %v590 = vpop.f32.mrf.mxu0
    %v591 = vadd.f32 0.0, %v590
    %v592 = vpop.f32.mrf.mxu0
    %v593 = vadd.f32 0.0, %v592
    %594 = vdwg.mxu0
    %v595 = vadd.f32 %v449, %v520
    %v596 = vadd.f32 %v450, %v522
    %v597 = vadd.f32 %v451, %v591
    %v598 = vadd.f32 %v452, %v593
    %v599 = vxor.u32 %v595, 2147483648
    %v600 = vmul.f32 %v599, 1.442695
    %v601 = vpow.pop %v600
    %v602 = vadd.f32 %v601, 1.0
    %v603 = vrcp.pop %v602
    %v604 = vmul.f32 1.0, %v603
    %v605 = vxor.u32 %v596, 2147483648
    %v606 = vmul.f32 %v605, 1.442695
    %v607 = vpow.pop %v606
    %v608 = vadd.f32 %v607, 1.0
    %v609 = vrcp.pop %v608
    %v610 = vmul.f32 1.0, %v609
    %v611 = vtanh.pop %v597
    %v612 = vxor.u32 %v598, 2147483648
    %v613 = vmul.f32 %v612, 1.442695
    %v614 = vpow.pop %v613
    %v615 = vadd.f32 %v614, 1.0
    %v616 = vrcp.pop %v615
    %v617 = vmul.f32 1.0, %v616
    %v618 = vmul.f32 %v610, %v443
    %v619 = vmul.f32 %v604, %v611
    %v620 = vadd.f32 %v618, %v619
    %v621 = vtanh.pop %v620
    %v622 = vmul.f32 %v617, %v621
    %s623 = scalar_lea.vmem %s4, 16
    %624 = vst [vmem:[%s623] sm:$0xff] %v622
    %s625 = scalar_lea.vmem %s0, 96
    %v626 = vld [vmem:[%s625] sm:$0xff]
    %v627 = vld [vmem:[%s625 + $0x8] sm:$0xff]
    %v628 = vld [vmem:[%s625 + $0x10] sm:$0xff]
    %v629 = vld [vmem:[%s625 + $0x18] sm:$0xff]
    %630 = vmatprep.subr.mxu0 %v91
    %631 = vmatpush1.msra.mxu0 %v90
    %632 = vmatprep.subr.mxu0 %v87
    %633 = vmatpush1.msra.mxu0 %v86
    %634 = vmatprep.subr.mxu0 %v83
    %635 = vmatpush1.msra.mxu0 %v82
    %636 = vmatprep.subr.mxu0 %v79
    %637 = vmatpush1.msra.mxu0 %v78
    %638 = vmatprep.subr.mxu0 %v75
    %639 = vmatpush1.msra.mxu0 %v74
    %640 = vmatprep.subr.mxu0 %v71
    %641 = vmatpush1.msra.mxu0 %v70
    %642 = vmatprep.subr.mxu0 %v67
    %643 = vmatpush1.msra.mxu0 %v66
    %644 = vmatprep.subr.mxu0 %v63
    %645 = vmatpush1.msra.mxu0 %v62
    %646 = vmatprep.subr.mxu0 %v59
    %647 = vmatpush1.msra.mxu0 %v58
    %648 = vmatprep.subr.mxu0 %v55
    %649 = vmatpush1.msra.mxu0 %v54
    %650 = vmatprep.subr.mxu0 %v51
    %651 = vmatpush1.msra.mxu0 %v50
    %652 = vmatprep.subr.mxu0 %v47
    %653 = vmatpush1.msra.mxu0 %v46
    %654 = vmatprep.subr.mxu0 %v43
    %655 = vmatpush1.msra.mxu0 %v42
    %656 = vmatprep.subr.mxu0 %v39
    %657 = vmatpush1.msra.mxu0 %v38
    %658 = vmatprep.subr.mxu0 %v35
    %659 = vmatpush1.msra.mxu0 %v34
    %660 = vmatprep.subr.mxu0 %v31
    %661 = vmatpush1.msra.mxu0 %v30
    %662 = vmatprep.subr.mxu0 0.0
    %663 = vmatpush2.msra.mxu0 0.0
    %664 = vmatprep.subr.mxu0 0.0
    %665 = vmatpush2.msra.mxu0 0.0
    %666 = vmatprep.subr.mxu0 0.0
    %667 = vmatpush2.msra.mxu0 0.0
    %668 = vmatprep.subr.mxu0 0.0
    %669 = vmatpush2.msra.mxu0 0.0
    %670 = vmatprep.subr.mxu0 0.0
    %671 = vmatpush2.msra.mxu0 0.0
    %672 = vmatprep.subr.mxu0 0.0
    %673 = vmatpush2.msra.mxu0 0.0
    %674 = vmatprep.subr.mxu0 0.0
    %675 = vmatpush2.msra.mxu0 0.0
    %676 = vmatprep.subr.mxu0 0.0
    %677 = vmatpush2.msra.mxu0 0.0
    %678 = vmatprep.subr.mxu0 0.0
    %679 = vmatpush2.msra.mxu0 0.0
    %680 = vmatprep.subr.mxu0 0.0
    %681 = vmatpush2.msra.mxu0 0.0
    %682 = vmatprep.subr.mxu0 0.0
    %683 = vmatpush2.msra.mxu0 0.0
    %684 = vmatprep.subr.mxu0 0.0
    %685 = vmatpush2.msra.mxu0 0.0
    %686 = vmatprep.subr.mxu0 0.0
    %687 = vmatpush2.msra.mxu0 0.0
    %688 = vmatprep.subr.mxu0 0.0
    %689 = vmatpush2.msra.mxu0 0.0
    %690 = vmatprep.subr.mxu0 0.0
    %691 = vmatpush2.msra.mxu0 0.0
    %692 = vmatprep.subr.mxu0 0.0
    %693 = vmatpush2.msra.mxu0 0.0
    %694 = vmatprep.mubr.f32.mxu0 0.0
    %695 = vmatmul.mubr.f32.gmra.mxu0 %v622
    %v696 = vpop.f32.mrf.mxu0
    %v697 = vadd.f32 0.0, %v696
    %v698 = vpop.f32.mrf.mxu0
    %v699 = vadd.f32 0.0, %v698
    %700 = vdwg.mxu0
    %701 = vmatprep.subr.mxu0 %v93
    %702 = vmatpush1.msra.mxu0 %v92
    %703 = vmatprep.subr.mxu0 %v89
    %704 = vmatpush1.msra.mxu0 %v88
    %705 = vmatprep.subr.mxu0 %v85
    %706 = vmatpush1.msra.mxu0 %v84
    %707 = vmatprep.subr.mxu0 %v81
    %708 = vmatpush1.msra.mxu0 %v80
    %709 = vmatprep.subr.mxu0 %v77
    %710 = vmatpush1.msra.mxu0 %v76
    %711 = vmatprep.subr.mxu0 %v73
    %712 = vmatpush1.msra.mxu0 %v72
    %713 = vmatprep.subr.mxu0 %v69
    %714 = vmatpush1.msra.mxu0 %v68
    %715 = vmatprep.subr.mxu0 %v65
    %716 = vmatpush1.msra.mxu0 %v64
    %717 = vmatprep.subr.mxu0 %v61
    %718 = vmatpush1.msra.mxu0 %v60
    %719 = vmatprep.subr.mxu0 %v57
    %720 = vmatpush1.msra.mxu0 %v56
    %721 = vmatprep.subr.mxu0 %v53
    %722 = vmatpush1.msra.mxu0 %v52
    %723 = vmatprep.subr.mxu0 %v49
    %724 = vmatpush1.msra.mxu0 %v48
    %725 = vmatprep.subr.mxu0 %v45
    %726 = vmatpush1.msra.mxu0 %v44
    %727 = vmatprep.subr.mxu0 %v41
    %728 = vmatpush1.msra.mxu0 %v40
    %729 = vmatprep.subr.mxu0 %v37
    %730 = vmatpush1.msra.mxu0 %v36
    %731 = vmatprep.subr.mxu0 %v33
    %732 = vmatpush1.msra.mxu0 %v32
    %733 = vmatprep.subr.mxu0 0.0
    %734 = vmatpush2.msra.mxu0 0.0
    %735 = vmatprep.subr.mxu0 0.0
    %736 = vmatpush2.msra.mxu0 0.0
    %737 = vmatprep.subr.mxu0 0.0
    %738 = vmatpush2.msra.mxu0 0.0
    %739 = vmatprep.subr.mxu0 0.0
    %740 = vmatpush2.msra.mxu0 0.0
    %741 = vmatprep.subr.mxu0 0.0
    %742 = vmatpush2.msra.mxu0 0.0
    %743 = vmatprep.subr.mxu0 0.0
    %744 = vmatpush2.msra.mxu0 0.0
    %745 = vmatprep.subr.mxu0 0.0
    %746 = vmatpush2.msra.mxu0 0.0
    %747 = vmatprep.subr.mxu0 0.0
    %748 = vmatpush2.msra.mxu0 0.0
    %749 = vmatprep.subr.mxu0 0.0
    %750 = vmatpush2.msra.mxu0 0.0
    %751 = vmatprep.subr.mxu0 0.0
    %752 = vmatpush2.msra.mxu0 0.0
    %753 = vmatprep.subr.mxu0 0.0
    %754 = vmatpush2.msra.mxu0 0.0
    %755 = vmatprep.subr.mxu0 0.0
    %756 = vmatpush2.msra.mxu0 0.0
    %757 = vmatprep.subr.mxu0 0.0
    %758 = vmatpush2.msra.mxu0 0.0
    %759 = vmatprep.subr.mxu0 0.0
    %760 = vmatpush2.msra.mxu0 0.0
    %761 = vmatprep.subr.mxu0 0.0
    %762 = vmatpush2.msra.mxu0 0.0
    %763 = vmatprep.subr.mxu0 0.0
    %764 = vmatpush2.msra.mxu0 0.0
    %765 = vmatprep.mubr.f32.mxu0 0.0
    %766 = vmatmul.mubr.f32.gmra.mxu0 %v622
    %v767 = vpop.f32.mrf.mxu0
    %v768 = vadd.f32 0.0, %v767
    %v769 = vpop.f32.mrf.mxu0
    %v770 = vadd.f32 0.0, %v769
    %771 = vdwg.mxu0
    %v772 = vadd.f32 %v626, %v697
    %v773 = vadd.f32 %v627, %v699
    %v774 = vadd.f32 %v628, %v768
    %v775 = vadd.f32 %v629, %v770
    %v776 = vxor.u32 %v772, 2147483648
    %v777 = vmul.f32 %v776, 1.442695
    %v778 = vpow.pop %v777
    %v779 = vadd.f32 %v778, 1.0
    %v780 = vrcp.pop %v779
    %v781 = vmul.f32 1.0, %v780
    %v782 = vxor.u32 %v773, 2147483648
    %v783 = vmul.f32 %v782, 1.442695
    %v784 = vpow.pop %v783
    %v785 = vadd.f32 %v784, 1.0
    %v786 = vrcp.pop %v785
    %v787 = vmul.f32 1.0, %v786
    %v788 = vtanh.pop %v774
    %v789 = vxor.u32 %v775, 2147483648
    %v790 = vmul.f32 %v789, 1.442695
    %v791 = vpow.pop %v790
    %v792 = vadd.f32 %v791, 1.0
    %v793 = vrcp.pop %v792
    %v794 = vmul.f32 1.0, %v793
    %v795 = vmul.f32 %v787, %v620
    %v796 = vmul.f32 %v781, %v788
    %v797 = vadd.f32 %v795, %v796
    %v798 = vtanh.pop %v797
    %v799 = vmul.f32 %v794, %v798
    %s800 = scalar_lea.vmem %s4, 24
    %801 = vst [vmem:[%s800] sm:$0xff] %v799
    %s802 = scalar_lea.vmem %s0, 128
    %v803 = vld [vmem:[%s802] sm:$0xff]
    %v804 = vld [vmem:[%s802 + $0x8] sm:$0xff]
    %v805 = vld [vmem:[%s802 + $0x10] sm:$0xff]
    %v806 = vld [vmem:[%s802 + $0x18] sm:$0xff]
    %807 = vmatprep.subr.mxu0 %v91
    %808 = vmatpush1.msra.mxu0 %v90
    %809 = vmatprep.subr.mxu0 %v87
    %810 = vmatpush1.msra.mxu0 %v86
    %811 = vmatprep.subr.mxu0 %v83
    %812 = vmatpush1.msra.mxu0 %v82
    %813 = vmatprep.subr.mxu0 %v79
    %814 = vmatpush1.msra.mxu0 %v78
    %815 = vmatprep.subr.mxu0 %v75
    %816 = vmatpush1.msra.mxu0 %v74
    %817 = vmatprep.subr.mxu0 %v71
    %818 = vmatpush1.msra.mxu0 %v70
    %819 = vmatprep.subr.mxu0 %v67
    %820 = vmatpush1.msra.mxu0 %v66
    %821 = vmatprep.subr.mxu0 %v63
    %822 = vmatpush1.msra.mxu0 %v62
    %823 = vmatprep.subr.mxu0 %v59
    %824 = vmatpush1.msra.mxu0 %v58
    %825 = vmatprep.subr.mxu0 %v55
    %826 = vmatpush1.msra.mxu0 %v54
    %827 = vmatprep.subr.mxu0 %v51
    %828 = vmatpush1.msra.mxu0 %v50
    %829 = vmatprep.subr.mxu0 %v47
    %830 = vmatpush1.msra.mxu0 %v46
    %831 = vmatprep.subr.mxu0 %v43
    %832 = vmatpush1.msra.mxu0 %v42
    %833 = vmatprep.subr.mxu0 %v39
    %834 = vmatpush1.msra.mxu0 %v38
    %835 = vmatprep.subr.mxu0 %v35
    %836 = vmatpush1.msra.mxu0 %v34
    %837 = vmatprep.subr.mxu0 %v31
    %838 = vmatpush1.msra.mxu0 %v30
    %839 = vmatprep.subr.mxu0 0.0
    %840 = vmatpush2.msra.mxu0 0.0
    %841 = vmatprep.subr.mxu0 0.0
    %842 = vmatpush2.msra.mxu0 0.0
    %843 = vmatprep.subr.mxu0 0.0
    %844 = vmatpush2.msra.mxu0 0.0
    %845 = vmatprep.subr.mxu0 0.0
    %846 = vmatpush2.msra.mxu0 0.0
    %847 = vmatprep.subr.mxu0 0.0
    %848 = vmatpush2.msra.mxu0 0.0
    %849 = vmatprep.subr.mxu0 0.0
    %850 = vmatpush2.msra.mxu0 0.0
    %851 = vmatprep.subr.mxu0 0.0
    %852 = vmatpush2.msra.mxu0 0.0
    %853 = vmatprep.subr.mxu0 0.0
    %854 = vmatpush2.msra.mxu0 0.0
    %855 = vmatprep.subr.mxu0 0.0
    %856 = vmatpush2.msra.mxu0 0.0
    %857 = vmatprep.subr.mxu0 0.0
    %858 = vmatpush2.msra.mxu0 0.0
    %859 = vmatprep.subr.mxu0 0.0
    %860 = vmatpush2.msra.mxu0 0.0
    %861 = vmatprep.subr.mxu0 0.0
    %862 = vmatpush2.msra.mxu0 0.0
    %863 = vmatprep.subr.mxu0 0.0
    %864 = vmatpush2.msra.mxu0 0.0
    %865 = vmatprep.subr.mxu0 0.0
    %866 = vmatpush2.msra.mxu0 0.0
    %867 = vmatprep.subr.mxu0 0.0
    %868 = vmatpush2.msra.mxu0 0.0
    %869 = vmatprep.subr.mxu0 0.0
    %870 = vmatpush2.msra.mxu0 0.0
    %871 = vmatprep.mubr.f32.mxu0 0.0
    %872 = vmatmul.mubr.f32.gmra.mxu0 %v799
    %v873 = vpop.f32.mrf.mxu0
    %v874 = vadd.f32 0.0, %v873
    %v875 = vpop.f32.mrf.mxu0
    %v876 = vadd.f32 0.0, %v875
    %877 = vdwg.mxu0
    %878 = vmatprep.subr.mxu0 %v93
    %879 = vmatpush1.msra.mxu0 %v92
    %880 = vmatprep.subr.mxu0 %v89
    %881 = vmatpush1.msra.mxu0 %v88
    %882 = vmatprep.subr.mxu0 %v85
    %883 = vmatpush1.msra.mxu0 %v84
    %884 = vmatprep.subr.mxu0 %v81
    %885 = vmatpush1.msra.mxu0 %v80
    %886 = vmatprep.subr.mxu0 %v77
    %887 = vmatpush1.msra.mxu0 %v76
    %888 = vmatprep.subr.mxu0 %v73
    %889 = vmatpush1.msra.mxu0 %v72
    %890 = vmatprep.subr.mxu0 %v69
    %891 = vmatpush1.msra.mxu0 %v68
    %892 = vmatprep.subr.mxu0 %v65
    %893 = vmatpush1.msra.mxu0 %v64
    %894 = vmatprep.subr.mxu0 %v61
    %895 = vmatpush1.msra.mxu0 %v60
    %896 = vmatprep.subr.mxu0 %v57
    %897 = vmatpush1.msra.mxu0 %v56
    %898 = vmatprep.subr.mxu0 %v53
    %899 = vmatpush1.msra.mxu0 %v52
    %900 = vmatprep.subr.mxu0 %v49
    %901 = vmatpush1.msra.mxu0 %v48
    %902 = vmatprep.subr.mxu0 %v45
    %903 = vmatpush1.msra.mxu0 %v44
    %904 = vmatprep.subr.mxu0 %v41
    %905 = vmatpush1.msra.mxu0 %v40
    %906 = vmatprep.subr.mxu0 %v37
    %907 = vmatpush1.msra.mxu0 %v36
    %908 = vmatprep.subr.mxu0 %v33
    %909 = vmatpush1.msra.mxu0 %v32
    %910 = vmatprep.subr.mxu0 0.0
    %911 = vmatpush2.msra.mxu0 0.0
    %912 = vmatprep.subr.mxu0 0.0
    %913 = vmatpush2.msra.mxu0 0.0
    %914 = vmatprep.subr.mxu0 0.0
    %915 = vmatpush2.msra.mxu0 0.0
    %916 = vmatprep.subr.mxu0 0.0
    %917 = vmatpush2.msra.mxu0 0.0
    %918 = vmatprep.subr.mxu0 0.0
    %919 = vmatpush2.msra.mxu0 0.0
    %920 = vmatprep.subr.mxu0 0.0
    %921 = vmatpush2.msra.mxu0 0.0
    %922 = vmatprep.subr.mxu0 0.0
    %923 = vmatpush2.msra.mxu0 0.0
    %924 = vmatprep.subr.mxu0 0.0
    %925 = vmatpush2.msra.mxu0 0.0
    %926 = vmatprep.subr.mxu0 0.0
    %927 = vmatpush2.msra.mxu0 0.0
    %928 = vmatprep.subr.mxu0 0.0
    %929 = vmatpush2.msra.mxu0 0.0
    %930 = vmatprep.subr.mxu0 0.0
    %931 = vmatpush2.msra.mxu0 0.0
    %932 = vmatprep.subr.mxu0 0.0
    %933 = vmatpush2.msra.mxu0 0.0
    %934 = vmatprep.subr.mxu0 0.0
    %935 = vmatpush2.msra.mxu0 0.0
    %936 = vmatprep.subr.mxu0 0.0
    %937 = vmatpush2.msra.mxu0 0.0
    %938 = vmatprep.subr.mxu0 0.0
    %939 = vmatpush2.msra.mxu0 0.0
    %940 = vmatprep.subr.mxu0 0.0
    %941 = vmatpush2.msra.mxu0 0.0
    %942 = vmatprep.mubr.f32.mxu0 0.0
    %943 = vmatmul.mubr.f32.gmra.mxu0 %v799
    %v944 = vpop.f32.mrf.mxu0
    %v945 = vadd.f32 0.0, %v944
    %v946 = vpop.f32.mrf.mxu0
    %v947 = vadd.f32 0.0, %v946
    %948 = vdwg.mxu0
    %v949 = vadd.f32 %v803, %v874
    %v950 = vadd.f32 %v804, %v876
    %v951 = vadd.f32 %v805, %v945
    %v952 = vadd.f32 %v806, %v947
    %v953 = vxor.u32 %v949, 2147483648
    %v954 = vmul.f32 %v953, 1.442695
    %v955 = vpow.pop %v954
    %v956 = vadd.f32 %v955, 1.0
    %v957 = vrcp.pop %v956
    %v958 = vmul.f32 1.0, %v957
    %v959 = vxor.u32 %v950, 2147483648
    %v960 = vmul.f32 %v959, 1.442695
    %v961 = vpow.pop %v960
    %v962 = vadd.f32 %v961, 1.0
    %v963 = vrcp.pop %v962
    %v964 = vmul.f32 1.0, %v963
    %v965 = vtanh.pop %v951
    %v966 = vxor.u32 %v952, 2147483648
    %v967 = vmul.f32 %v966, 1.442695
    %v968 = vpow.pop %v967
    %v969 = vadd.f32 %v968, 1.0
    %v970 = vrcp.pop %v969
    %v971 = vmul.f32 1.0, %v970
    %v972 = vmul.f32 %v964, %v797
    %v973 = vmul.f32 %v958, %v965
    %v974 = vadd.f32 %v972, %v973
    %v975 = vtanh.pop %v974
    %v976 = vmul.f32 %v971, %v975
    %s977 = scalar_lea.vmem %s4, 32
    %978 = vst [vmem:[%s977] sm:$0xff] %v976
    %s979 = scalar_lea.vmem %s0, 160
    %v980 = vld [vmem:[%s979] sm:$0xff]
    %v981 = vld [vmem:[%s979 + $0x8] sm:$0xff]
    %v982 = vld [vmem:[%s979 + $0x10] sm:$0xff]
    %v983 = vld [vmem:[%s979 + $0x18] sm:$0xff]
    %984 = vmatprep.subr.mxu0 %v91
    %985 = vmatpush1.msra.mxu0 %v90
    %986 = vmatprep.subr.mxu0 %v87
    %987 = vmatpush1.msra.mxu0 %v86
    %988 = vmatprep.subr.mxu0 %v83
    %989 = vmatpush1.msra.mxu0 %v82
    %990 = vmatprep.subr.mxu0 %v79
    %991 = vmatpush1.msra.mxu0 %v78
    %992 = vmatprep.subr.mxu0 %v75
    %993 = vmatpush1.msra.mxu0 %v74
    %994 = vmatprep.subr.mxu0 %v71
    %995 = vmatpush1.msra.mxu0 %v70
    %996 = vmatprep.subr.mxu0 %v67
    %997 = vmatpush1.msra.mxu0 %v66
    %998 = vmatprep.subr.mxu0 %v63
    %999 = vmatpush1.msra.mxu0 %v62
    %1000 = vmatprep.subr.mxu0 %v59
    %1001 = vmatpush1.msra.mxu0 %v58
    %1002 = vmatprep.subr.mxu0 %v55
    %1003 = vmatpush1.msra.mxu0 %v54
    %1004 = vmatprep.subr.mxu0 %v51
    %1005 = vmatpush1.msra.mxu0 %v50
    %1006 = vmatprep.subr.mxu0 %v47
    %1007 = vmatpush1.msra.mxu0 %v46
    %1008 = vmatprep.subr.mxu0 %v43
    %1009 = vmatpush1.msra.mxu0 %v42
    %1010 = vmatprep.subr.mxu0 %v39
    %1011 = vmatpush1.msra.mxu0 %v38
    %1012 = vmatprep.subr.mxu0 %v35
    %1013 = vmatpush1.msra.mxu0 %v34
    %1014 = vmatprep.subr.mxu0 %v31
    %1015 = vmatpush1.msra.mxu0 %v30
    %1016 = vmatprep.subr.mxu0 0.0
    %1017 = vmatpush2.msra.mxu0 0.0
    %1018 = vmatprep.subr.mxu0 0.0
    %1019 = vmatpush2.msra.mxu0 0.0
    %1020 = vmatprep.subr.mxu0 0.0
    %1021 = vmatpush2.msra.mxu0 0.0
    %1022 = vmatprep.subr.mxu0 0.0
    %1023 = vmatpush2.msra.mxu0 0.0
    %1024 = vmatprep.subr.mxu0 0.0
    %1025 = vmatpush2.msra.mxu0 0.0
    %1026 = vmatprep.subr.mxu0 0.0
    %1027 = vmatpush2.msra.mxu0 0.0
    %1028 = vmatprep.subr.mxu0 0.0
    %1029 = vmatpush2.msra.mxu0 0.0
    %1030 = vmatprep.subr.mxu0 0.0
    %1031 = vmatpush2.msra.mxu0 0.0
    %1032 = vmatprep.subr.mxu0 0.0
    %1033 = vmatpush2.msra.mxu0 0.0
    %1034 = vmatprep.subr.mxu0 0.0
    %1035 = vmatpush2.msra.mxu0 0.0
    %1036 = vmatprep.subr.mxu0 0.0
    %1037 = vmatpush2.msra.mxu0 0.0
    %1038 = vmatprep.subr.mxu0 0.0
    %1039 = vmatpush2.msra.mxu0 0.0
    %1040 = vmatprep.subr.mxu0 0.0
    %1041 = vmatpush2.msra.mxu0 0.0
    %1042 = vmatprep.subr.mxu0 0.0
    %1043 = vmatpush2.msra.mxu0 0.0
    %1044 = vmatprep.subr.mxu0 0.0
    %1045 = vmatpush2.msra.mxu0 0.0
    %1046 = vmatprep.subr.mxu0 0.0
    %1047 = vmatpush2.msra.mxu0 0.0
    %1048 = vmatprep.mubr.f32.mxu0 0.0
    %1049 = vmatmul.mubr.f32.gmra.mxu0 %v976
    %v1050 = vpop.f32.mrf.mxu0
    %v1051 = vadd.f32 0.0, %v1050
    %v1052 = vpop.f32.mrf.mxu0
    %v1053 = vadd.f32 0.0, %v1052
    %1054 = vdwg.mxu0
    %1055 = vmatprep.subr.mxu0 %v93
    %1056 = vmatpush1.msra.mxu0 %v92
    %1057 = vmatprep.subr.mxu0 %v89
    %1058 = vmatpush1.msra.mxu0 %v88
    %1059 = vmatprep.subr.mxu0 %v85
    %1060 = vmatpush1.msra.mxu0 %v84
    %1061 = vmatprep.subr.mxu0 %v81
    %1062 = vmatpush1.msra.mxu0 %v80
    %1063 = vmatprep.subr.mxu0 %v77
    %1064 = vmatpush1.msra.mxu0 %v76
    %1065 = vmatprep.subr.mxu0 %v73
    %1066 = vmatpush1.msra.mxu0 %v72
    %1067 = vmatprep.subr.mxu0 %v69
    %1068 = vmatpush1.msra.mxu0 %v68
    %1069 = vmatprep.subr.mxu0 %v65
    %1070 = vmatpush1.msra.mxu0 %v64
    %1071 = vmatprep.subr.mxu0 %v61
    %1072 = vmatpush1.msra.mxu0 %v60
    %1073 = vmatprep.subr.mxu0 %v57
    %1074 = vmatpush1.msra.mxu0 %v56
    %1075 = vmatprep.subr.mxu0 %v53
    %1076 = vmatpush1.msra.mxu0 %v52
    %1077 = vmatprep.subr.mxu0 %v49
    %1078 = vmatpush1.msra.mxu0 %v48
    %1079 = vmatprep.subr.mxu0 %v45
    %1080 = vmatpush1.msra.mxu0 %v44
    %1081 = vmatprep.subr.mxu0 %v41
    %1082 = vmatpush1.msra.mxu0 %v40
    %1083 = vmatprep.subr.mxu0 %v37
    %1084 = vmatpush1.msra.mxu0 %v36
    %1085 = vmatprep.subr.mxu0 %v33
    %1086 = vmatpush1.msra.mxu0 %v32
    %1087 = vmatprep.subr.mxu0 0.0
    %1088 = vmatpush2.msra.mxu0 0.0
    %1089 = vmatprep.subr.mxu0 0.0
    %1090 = vmatpush2.msra.mxu0 0.0
    %1091 = vmatprep.subr.mxu0 0.0
    %1092 = vmatpush2.msra.mxu0 0.0
    %1093 = vmatprep.subr.mxu0 0.0
    %1094 = vmatpush2.msra.mxu0 0.0
    %1095 = vmatprep.subr.mxu0 0.0
    %1096 = vmatpush2.msra.mxu0 0.0
    %1097 = vmatprep.subr.mxu0 0.0
    %1098 = vmatpush2.msra.mxu0 0.0
    %1099 = vmatprep.subr.mxu0 0.0
    %1100 = vmatpush2.msra.mxu0 0.0
    %1101 = vmatprep.subr.mxu0 0.0
    %1102 = vmatpush2.msra.mxu0 0.0
    %1103 = vmatprep.subr.mxu0 0.0
    %1104 = vmatpush2.msra.mxu0 0.0
    %1105 = vmatprep.subr.mxu0 0.0
    %1106 = vmatpush2.msra.mxu0 0.0
    %1107 = vmatprep.subr.mxu0 0.0
    %1108 = vmatpush2.msra.mxu0 0.0
    %1109 = vmatprep.subr.mxu0 0.0
    %1110 = vmatpush2.msra.mxu0 0.0
    %1111 = vmatprep.subr.mxu0 0.0
    %1112 = vmatpush2.msra.mxu0 0.0
    %1113 = vmatprep.subr.mxu0 0.0
    %1114 = vmatpush2.msra.mxu0 0.0
    %1115 = vmatprep.subr.mxu0 0.0
    %1116 = vmatpush2.msra.mxu0 0.0
    %1117 = vmatprep.subr.mxu0 0.0
    %1118 = vmatpush2.msra.mxu0 0.0
    %1119 = vmatprep.mubr.f32.mxu0 0.0
    %1120 = vmatmul.mubr.f32.gmra.mxu0 %v976
    %v1121 = vpop.f32.mrf.mxu0
    %v1122 = vadd.f32 0.0, %v1121
    %v1123 = vpop.f32.mrf.mxu0
    %v1124 = vadd.f32 0.0, %v1123
    %1125 = vdwg.mxu0
    %v1126 = vadd.f32 %v980, %v1051
    %v1127 = vadd.f32 %v981, %v1053
    %v1128 = vadd.f32 %v982, %v1122
    %v1129 = vadd.f32 %v983, %v1124
    %v1130 = vxor.u32 %v1126, 2147483648
    %v1131 = vmul.f32 %v1130, 1.442695
    %v1132 = vpow.pop %v1131
    %v1133 = vadd.f32 %v1132, 1.0
    %v1134 = vrcp.pop %v1133
    %v1135 = vmul.f32 1.0, %v1134
    %v1136 = vxor.u32 %v1127, 2147483648
    %v1137 = vmul.f32 %v1136, 1.442695
    %v1138 = vpow.pop %v1137
    %v1139 = vadd.f32 %v1138, 1.0
    %v1140 = vrcp.pop %v1139
    %v1141 = vmul.f32 1.0, %v1140
    %v1142 = vtanh.pop %v1128
    %v1143 = vxor.u32 %v1129, 2147483648
    %v1144 = vmul.f32 %v1143, 1.442695
    %v1145 = vpow.pop %v1144
    %v1146 = vadd.f32 %v1145, 1.0
    %v1147 = vrcp.pop %v1146
    %v1148 = vmul.f32 1.0, %v1147
    %v1149 = vmul.f32 %v1141, %v974
    %v1150 = vmul.f32 %v1135, %v1142
    %v1151 = vadd.f32 %v1149, %v1150
    %v1152 = vtanh.pop %v1151
    %v1153 = vmul.f32 %v1148, %v1152
    %s1154 = scalar_lea.vmem %s4, 40
    %1155 = vst [vmem:[%s1154] sm:$0xff] %v1153
    %s1156 = scalar_lea.vmem %s0, 192
    %v1157 = vld [vmem:[%s1156] sm:$0xff]
    %v1158 = vld [vmem:[%s1156 + $0x8] sm:$0xff]
    %v1159 = vld [vmem:[%s1156 + $0x10] sm:$0xff]
    %v1160 = vld [vmem:[%s1156 + $0x18] sm:$0xff]
    %1161 = vmatprep.subr.mxu0 %v91
    %1162 = vmatpush1.msra.mxu0 %v90
    %1163 = vmatprep.subr.mxu0 %v87
    %1164 = vmatpush1.msra.mxu0 %v86
    %1165 = vmatprep.subr.mxu0 %v83
    %1166 = vmatpush1.msra.mxu0 %v82
    %1167 = vmatprep.subr.mxu0 %v79
    %1168 = vmatpush1.msra.mxu0 %v78
    %1169 = vmatprep.subr.mxu0 %v75
    %1170 = vmatpush1.msra.mxu0 %v74
    %1171 = vmatprep.subr.mxu0 %v71
    %1172 = vmatpush1.msra.mxu0 %v70
    %1173 = vmatprep.subr.mxu0 %v67
    %1174 = vmatpush1.msra.mxu0 %v66
    %1175 = vmatprep.subr.mxu0 %v63
    %1176 = vmatpush1.msra.mxu0 %v62
    %1177 = vmatprep.subr.mxu0 %v59
    %1178 = vmatpush1.msra.mxu0 %v58
    %1179 = vmatprep.subr.mxu0 %v55
    %1180 = vmatpush1.msra.mxu0 %v54
    %1181 = vmatprep.subr.mxu0 %v51
    %1182 = vmatpush1.msra.mxu0 %v50
    %1183 = vmatprep.subr.mxu0 %v47
    %1184 = vmatpush1.msra.mxu0 %v46
    %1185 = vmatprep.subr.mxu0 %v43
    %1186 = vmatpush1.msra.mxu0 %v42
    %1187 = vmatprep.subr.mxu0 %v39
    %1188 = vmatpush1.msra.mxu0 %v38
    %1189 = vmatprep.subr.mxu0 %v35
    %1190 = vmatpush1.msra.mxu0 %v34
    %1191 = vmatprep.subr.mxu0 %v31
    %1192 = vmatpush1.msra.mxu0 %v30
    %1193 = vmatprep.subr.mxu0 0.0
    %1194 = vmatpush2.msra.mxu0 0.0
    %1195 = vmatprep.subr.mxu0 0.0
    %1196 = vmatpush2.msra.mxu0 0.0
    %1197 = vmatprep.subr.mxu0 0.0
    %1198 = vmatpush2.msra.mxu0 0.0
    %1199 = vmatprep.subr.mxu0 0.0
    %1200 = vmatpush2.msra.mxu0 0.0
    %1201 = vmatprep.subr.mxu0 0.0
    %1202 = vmatpush2.msra.mxu0 0.0
    %1203 = vmatprep.subr.mxu0 0.0
    %1204 = vmatpush2.msra.mxu0 0.0
    %1205 = vmatprep.subr.mxu0 0.0
    %1206 = vmatpush2.msra.mxu0 0.0
    %1207 = vmatprep.subr.mxu0 0.0
    %1208 = vmatpush2.msra.mxu0 0.0
    %1209 = vmatprep.subr.mxu0 0.0
    %1210 = vmatpush2.msra.mxu0 0.0
    %1211 = vmatprep.subr.mxu0 0.0
    %1212 = vmatpush2.msra.mxu0 0.0
    %1213 = vmatprep.subr.mxu0 0.0
    %1214 = vmatpush2.msra.mxu0 0.0
    %1215 = vmatprep.subr.mxu0 0.0
    %1216 = vmatpush2.msra.mxu0 0.0
    %1217 = vmatprep.subr.mxu0 0.0
    %1218 = vmatpush2.msra.mxu0 0.0
    %1219 = vmatprep.subr.mxu0 0.0
    %1220 = vmatpush2.msra.mxu0 0.0
    %1221 = vmatprep.subr.mxu0 0.0
    %1222 = vmatpush2.msra.mxu0 0.0
    %1223 = vmatprep.subr.mxu0 0.0
    %1224 = vmatpush2.msra.mxu0 0.0
    %1225 = vmatprep.mubr.f32.mxu0 0.0
    %1226 = vmatmul.mubr.f32.gmra.mxu0 %v1153
    %v1227 = vpop.f32.mrf.mxu0
    %v1228 = vadd.f32 0.0, %v1227
    %v1229 = vpop.f32.mrf.mxu0
    %v1230 = vadd.f32 0.0, %v1229
    %1231 = vdwg.mxu0
    %1232 = vmatprep.subr.mxu0 %v93
    %1233 = vmatpush1.msra.mxu0 %v92
    %1234 = vmatprep.subr.mxu0 %v89
    %1235 = vmatpush1.msra.mxu0 %v88
    %1236 = vmatprep.subr.mxu0 %v85
    %1237 = vmatpush1.msra.mxu0 %v84
    %1238 = vmatprep.subr.mxu0 %v81
    %1239 = vmatpush1.msra.mxu0 %v80
    %1240 = vmatprep.subr.mxu0 %v77
    %1241 = vmatpush1.msra.mxu0 %v76
    %1242 = vmatprep.subr.mxu0 %v73
    %1243 = vmatpush1.msra.mxu0 %v72
    %1244 = vmatprep.subr.mxu0 %v69
    %1245 = vmatpush1.msra.mxu0 %v68
    %1246 = vmatprep.subr.mxu0 %v65
    %1247 = vmatpush1.msra.mxu0 %v64
    %1248 = vmatprep.subr.mxu0 %v61
    %1249 = vmatpush1.msra.mxu0 %v60
    %1250 = vmatprep.subr.mxu0 %v57
    %1251 = vmatpush1.msra.mxu0 %v56
    %1252 = vmatprep.subr.mxu0 %v53
    %1253 = vmatpush1.msra.mxu0 %v52
    %1254 = vmatprep.subr.mxu0 %v49
    %1255 = vmatpush1.msra.mxu0 %v48
    %1256 = vmatprep.subr.mxu0 %v45
    %1257 = vmatpush1.msra.mxu0 %v44
    %1258 = vmatprep.subr.mxu0 %v41
    %1259 = vmatpush1.msra.mxu0 %v40
    %1260 = vmatprep.subr.mxu0 %v37
    %1261 = vmatpush1.msra.mxu0 %v36
    %1262 = vmatprep.subr.mxu0 %v33
    %1263 = vmatpush1.msra.mxu0 %v32
    %1264 = vmatprep.subr.mxu0 0.0
    %1265 = vmatpush2.msra.mxu0 0.0
    %1266 = vmatprep.subr.mxu0 0.0
    %1267 = vmatpush2.msra.mxu0 0.0
    %1268 = vmatprep.subr.mxu0 0.0
    %1269 = vmatpush2.msra.mxu0 0.0
    %1270 = vmatprep.subr.mxu0 0.0
    %1271 = vmatpush2.msra.mxu0 0.0
    %1272 = vmatprep.subr.mxu0 0.0
    %1273 = vmatpush2.msra.mxu0 0.0
    %1274 = vmatprep.subr.mxu0 0.0
    %1275 = vmatpush2.msra.mxu0 0.0
    %1276 = vmatprep.subr.mxu0 0.0
    %1277 = vmatpush2.msra.mxu0 0.0
    %1278 = vmatprep.subr.mxu0 0.0
    %1279 = vmatpush2.msra.mxu0 0.0
    %1280 = vmatprep.subr.mxu0 0.0
    %1281 = vmatpush2.msra.mxu0 0.0
    %1282 = vmatprep.subr.mxu0 0.0
    %1283 = vmatpush2.msra.mxu0 0.0
    %1284 = vmatprep.subr.mxu0 0.0
    %1285 = vmatpush2.msra.mxu0 0.0
    %1286 = vmatprep.subr.mxu0 0.0
    %1287 = vmatpush2.msra.mxu0 0.0
    %1288 = vmatprep.subr.mxu0 0.0
    %1289 = vmatpush2.msra.mxu0 0.0
    %1290 = vmatprep.subr.mxu0 0.0
    %1291 = vmatpush2.msra.mxu0 0.0
    %1292 = vmatprep.subr.mxu0 0.0
    %1293 = vmatpush2.msra.mxu0 0.0
    %1294 = vmatprep.subr.mxu0 0.0
    %1295 = vmatpush2.msra.mxu0 0.0
    %1296 = vmatprep.mubr.f32.mxu0 0.0
    %1297 = vmatmul.mubr.f32.gmra.mxu0 %v1153
    %v1298 = vpop.f32.mrf.mxu0
    %v1299 = vadd.f32 0.0, %v1298
    %v1300 = vpop.f32.mrf.mxu0
    %v1301 = vadd.f32 0.0, %v1300
    %1302 = vdwg.mxu0
    %v1303 = vadd.f32 %v1157, %v1228
    %v1304 = vadd.f32 %v1158, %v1230
    %v1305 = vadd.f32 %v1159, %v1299
    %v1306 = vadd.f32 %v1160, %v1301
    %v1307 = vxor.u32 %v1303, 2147483648
    %v1308 = vmul.f32 %v1307, 1.442695
    %v1309 = vpow.pop %v1308
    %v1310 = vadd.f32 %v1309, 1.0
    %v1311 = vrcp.pop %v1310
    %v1312 = vmul.f32 1.0, %v1311
    %v1313 = vxor.u32 %v1304, 2147483648
    %v1314 = vmul.f32 %v1313, 1.442695
    %v1315 = vpow.pop %v1314
    %v1316 = vadd.f32 %v1315, 1.0
    %v1317 = vrcp.pop %v1316
    %v1318 = vmul.f32 1.0, %v1317
    %v1319 = vtanh.pop %v1305
    %v1320 = vxor.u32 %v1306, 2147483648
    %v1321 = vmul.f32 %v1320, 1.442695
    %v1322 = vpow.pop %v1321
    %v1323 = vadd.f32 %v1322, 1.0
    %v1324 = vrcp.pop %v1323
    %v1325 = vmul.f32 1.0, %v1324
    %v1326 = vmul.f32 %v1318, %v1151
    %v1327 = vmul.f32 %v1312, %v1319
    %v1328 = vadd.f32 %v1326, %v1327
    %v1329 = vtanh.pop %v1328
    %v1330 = vmul.f32 %v1325, %v1329
    %s1331 = scalar_lea.vmem %s4, 48
    %1332 = vst [vmem:[%s1331] sm:$0xff] %v1330
    %s1333 = scalar_lea.vmem %s0, 224
    %v1334 = vld [vmem:[%s1333] sm:$0xff]
    %v1335 = vld [vmem:[%s1333 + $0x8] sm:$0xff]
    %v1336 = vld [vmem:[%s1333 + $0x10] sm:$0xff]
    %v1337 = vld [vmem:[%s1333 + $0x18] sm:$0xff]
    %1338 = vmatprep.subr.mxu0 %v91
    %1339 = vmatpush1.msra.mxu0 %v90
    %1340 = vmatprep.subr.mxu0 %v87
    %1341 = vmatpush1.msra.mxu0 %v86
    %1342 = vmatprep.subr.mxu0 %v83
    %1343 = vmatpush1.msra.mxu0 %v82
    %1344 = vmatprep.subr.mxu0 %v79
    %1345 = vmatpush1.msra.mxu0 %v78
    %1346 = vmatprep.subr.mxu0 %v75
    %1347 = vmatpush1.msra.mxu0 %v74
    %1348 = vmatprep.subr.mxu0 %v71
    %1349 = vmatpush1.msra.mxu0 %v70
    %1350 = vmatprep.subr.mxu0 %v67
    %1351 = vmatpush1.msra.mxu0 %v66
    %1352 = vmatprep.subr.mxu0 %v63
    %1353 = vmatpush1.msra.mxu0 %v62
    %1354 = vmatprep.subr.mxu0 %v59
    %1355 = vmatpush1.msra.mxu0 %v58
    %1356 = vmatprep.subr.mxu0 %v55
    %1357 = vmatpush1.msra.mxu0 %v54
    %1358 = vmatprep.subr.mxu0 %v51
    %1359 = vmatpush1.msra.mxu0 %v50
    %1360 = vmatprep.subr.mxu0 %v47
    %1361 = vmatpush1.msra.mxu0 %v46
    %1362 = vmatprep.subr.mxu0 %v43
    %1363 = vmatpush1.msra.mxu0 %v42
    %1364 = vmatprep.subr.mxu0 %v39
    %1365 = vmatpush1.msra.mxu0 %v38
    %1366 = vmatprep.subr.mxu0 %v35
    %1367 = vmatpush1.msra.mxu0 %v34
    %1368 = vmatprep.subr.mxu0 %v31
    %1369 = vmatpush1.msra.mxu0 %v30
    %1370 = vmatprep.subr.mxu0 0.0
    %1371 = vmatpush2.msra.mxu0 0.0
    %1372 = vmatprep.subr.mxu0 0.0
    %1373 = vmatpush2.msra.mxu0 0.0
    %1374 = vmatprep.subr.mxu0 0.0
    %1375 = vmatpush2.msra.mxu0 0.0
    %1376 = vmatprep.subr.mxu0 0.0
    %1377 = vmatpush2.msra.mxu0 0.0
    %1378 = vmatprep.subr.mxu0 0.0
    %1379 = vmatpush2.msra.mxu0 0.0
    %1380 = vmatprep.subr.mxu0 0.0
    %1381 = vmatpush2.msra.mxu0 0.0
    %1382 = vmatprep.subr.mxu0 0.0
    %1383 = vmatpush2.msra.mxu0 0.0
    %1384 = vmatprep.subr.mxu0 0.0
    %1385 = vmatpush2.msra.mxu0 0.0
    %1386 = vmatprep.subr.mxu0 0.0
    %1387 = vmatpush2.msra.mxu0 0.0
    %1388 = vmatprep.subr.mxu0 0.0
    %1389 = vmatpush2.msra.mxu0 0.0
    %1390 = vmatprep.subr.mxu0 0.0
    %1391 = vmatpush2.msra.mxu0 0.0
    %1392 = vmatprep.subr.mxu0 0.0
    %1393 = vmatpush2.msra.mxu0 0.0
    %1394 = vmatprep.subr.mxu0 0.0
    %1395 = vmatpush2.msra.mxu0 0.0
    %1396 = vmatprep.subr.mxu0 0.0
    %1397 = vmatpush2.msra.mxu0 0.0
    %1398 = vmatprep.subr.mxu0 0.0
    %1399 = vmatpush2.msra.mxu0 0.0
    %1400 = vmatprep.subr.mxu0 0.0
    %1401 = vmatpush2.msra.mxu0 0.0
    %1402 = vmatprep.mubr.f32.mxu0 0.0
    %1403 = vmatmul.mubr.f32.gmra.mxu0 %v1330
    %v1404 = vpop.f32.mrf.mxu0
    %v1405 = vadd.f32 0.0, %v1404
    %v1406 = vpop.f32.mrf.mxu0
    %v1407 = vadd.f32 0.0, %v1406
    %1408 = vdwg.mxu0
    %1409 = vmatprep.subr.mxu0 %v93
    %1410 = vmatpush1.msra.mxu0 %v92
    %1411 = vmatprep.subr.mxu0 %v89
    %1412 = vmatpush1.msra.mxu0 %v88
    %1413 = vmatprep.subr.mxu0 %v85
    %1414 = vmatpush1.msra.mxu0 %v84
    %1415 = vmatprep.subr.mxu0 %v81
    %1416 = vmatpush1.msra.mxu0 %v80
    %1417 = vmatprep.subr.mxu0 %v77
    %1418 = vmatpush1.msra.mxu0 %v76
    %1419 = vmatprep.subr.mxu0 %v73
    %1420 = vmatpush1.msra.mxu0 %v72
    %1421 = vmatprep.subr.mxu0 %v69
    %1422 = vmatpush1.msra.mxu0 %v68
    %1423 = vmatprep.subr.mxu0 %v65
    %1424 = vmatpush1.msra.mxu0 %v64
    %1425 = vmatprep.subr.mxu0 %v61
    %1426 = vmatpush1.msra.mxu0 %v60
    %1427 = vmatprep.subr.mxu0 %v57
    %1428 = vmatpush1.msra.mxu0 %v56
    %1429 = vmatprep.subr.mxu0 %v53
    %1430 = vmatpush1.msra.mxu0 %v52
    %1431 = vmatprep.subr.mxu0 %v49
    %1432 = vmatpush1.msra.mxu0 %v48
    %1433 = vmatprep.subr.mxu0 %v45
    %1434 = vmatpush1.msra.mxu0 %v44
    %1435 = vmatprep.subr.mxu0 %v41
    %1436 = vmatpush1.msra.mxu0 %v40
    %1437 = vmatprep.subr.mxu0 %v37
    %1438 = vmatpush1.msra.mxu0 %v36
    %1439 = vmatprep.subr.mxu0 %v33
    %1440 = vmatpush1.msra.mxu0 %v32
    %1441 = vmatprep.subr.mxu0 0.0
    %1442 = vmatpush2.msra.mxu0 0.0
    %1443 = vmatprep.subr.mxu0 0.0
    %1444 = vmatpush2.msra.mxu0 0.0
    %1445 = vmatprep.subr.mxu0 0.0
    %1446 = vmatpush2.msra.mxu0 0.0
    %1447 = vmatprep.subr.mxu0 0.0
    %1448 = vmatpush2.msra.mxu0 0.0
    %1449 = vmatprep.subr.mxu0 0.0
    %1450 = vmatpush2.msra.mxu0 0.0
    %1451 = vmatprep.subr.mxu0 0.0
    %1452 = vmatpush2.msra.mxu0 0.0
    %1453 = vmatprep.subr.mxu0 0.0
    %1454 = vmatpush2.msra.mxu0 0.0
    %1455 = vmatprep.subr.mxu0 0.0
    %1456 = vmatpush2.msra.mxu0 0.0
    %1457 = vmatprep.subr.mxu0 0.0
    %1458 = vmatpush2.msra.mxu0 0.0
    %1459 = vmatprep.subr.mxu0 0.0
    %1460 = vmatpush2.msra.mxu0 0.0
    %1461 = vmatprep.subr.mxu0 0.0
    %1462 = vmatpush2.msra.mxu0 0.0
    %1463 = vmatprep.subr.mxu0 0.0
    %1464 = vmatpush2.msra.mxu0 0.0
    %1465 = vmatprep.subr.mxu0 0.0
    %1466 = vmatpush2.msra.mxu0 0.0
    %1467 = vmatprep.subr.mxu0 0.0
    %1468 = vmatpush2.msra.mxu0 0.0
    %1469 = vmatprep.subr.mxu0 0.0
    %1470 = vmatpush2.msra.mxu0 0.0
    %1471 = vmatprep.subr.mxu0 0.0
    %1472 = vmatpush2.msra.mxu0 0.0
    %1473 = vmatprep.mubr.f32.mxu0 0.0
    %1474 = vmatmul.mubr.f32.gmra.mxu0 %v1330
    %v1475 = vpop.f32.mrf.mxu0
    %v1476 = vadd.f32 0.0, %v1475
    %v1477 = vpop.f32.mrf.mxu0
    %v1478 = vadd.f32 0.0, %v1477
    %1479 = vdwg.mxu0
    %v1480 = vadd.f32 %v1334, %v1405
    %v1481 = vadd.f32 %v1335, %v1407
    %v1482 = vadd.f32 %v1336, %v1476
    %v1483 = vadd.f32 %v1337, %v1478
    %v1484 = vxor.u32 %v1480, 2147483648
    %v1485 = vmul.f32 %v1484, 1.442695
    %v1486 = vpow.pop %v1485
    %v1487 = vadd.f32 %v1486, 1.0
    %v1488 = vrcp.pop %v1487
    %v1489 = vmul.f32 1.0, %v1488
    %v1490 = vxor.u32 %v1481, 2147483648
    %v1491 = vmul.f32 %v1490, 1.442695
    %v1492 = vpow.pop %v1491
    %v1493 = vadd.f32 %v1492, 1.0
    %v1494 = vrcp.pop %v1493
    %v1495 = vmul.f32 1.0, %v1494
    %v1496 = vtanh.pop %v1482
    %v1497 = vxor.u32 %v1483, 2147483648
    %v1498 = vmul.f32 %v1497, 1.442695
    %v1499 = vpow.pop %v1498
    %v1500 = vadd.f32 %v1499, 1.0
    %v1501 = vrcp.pop %v1500
    %v1502 = vmul.f32 1.0, %v1501
    %v1503 = vmul.f32 %v1495, %v1328
    %v1504 = vmul.f32 %v1489, %v1496
    %v1505 = vadd.f32 %v1503, %v1504
    %v1506 = vtanh.pop %v1505
    %v1507 = vmul.f32 %v1502, %v1506
    %s1508 = scalar_lea.vmem %s4, 56
    %1509 = vst [vmem:[%s1508] sm:$0xff] %v1507
    %1510 = vst [vmem:[#allocation2] sm:$0xff] %v1507
    %1511 = vst [vmem:[#allocation3] sm:$0xff] %v1505
    // Predicated region
    $region22: #{lstm_model_forward.4} parent=1 // pred_check
      %p1512 = pneg %p22
    $region23: #{lstm_model_forward.4} parent=1 // pred_check_branch
      %1514 = sbr.rel (%p1512) target = $region25
    $region24: #{lstm_model_forward.4} parent=1 // pred_region
      %1515 = vst [vmem:[#allocation4] sm:$0xff] %v1507
      %1516 = vst [vmem:[#allocation6] sm:$0xff] %v1505
    $region25: #{lstm_model_forward.4} parent=1 // pred_fallthru
      _
    // Predicated region
    $region26: #{lstm_model_forward.4} parent=1 // pred_check
      _
    $region27: #{lstm_model_forward.4} parent=1 // pred_check_branch
      %1518 = sbr.rel (0) target = $region29
    $region28: #{lstm_model_forward.4} parent=1 // pred_region
      _
    $region29: #{lstm_model_forward.4} parent=1 // pred_fallthru
      _
    // Predicated region
    $region30: #{lstm_model_forward.4} parent=1 // pred_check
      _
    $region31: #{lstm_model_forward.4} parent=1 // pred_check_branch
      %1520 = sbr.rel (0) target = $region33
    $region32: #{lstm_model_forward.4} parent=1 // pred_region
      %s1522 = ssub.s32 128, 128
      %1523 = vsyncadd [#allocation5], %s1522
      %s1525 = sshll.u32 [#allocation4], 4
      %s1526 = int_to_ptr.vmem [resolvable:$true] %s1525
      %1528 = dma.vmem_to_hbm [thread:$0]  %s1526, 128, %s5, [#allocation5]
    $region33: #{lstm_model_forward.4} parent=1 // pred_fallthru
      _
    // Predicated region
    $region34: #{lstm_model_forward.4} parent=1 // pred_check
      _
    $region35: #{lstm_model_forward.4} parent=1 // pred_check_branch
      %1530 = sbr.rel (0) target = $region37
    $region36: #{lstm_model_forward.4} parent=1 // pred_region
      %s1532 = ssub.s32 128, 128
      %1533 = vsyncadd [#allocation7], %s1532
      %s1535 = sshll.u32 [#allocation6], 4
      %s1536 = int_to_ptr.vmem [resolvable:$true] %s1535
      %1538 = dma.vmem_to_hbm [thread:$0]  %s1536, 128, %s6, [#allocation7]
    $region37: #{lstm_model_forward.4} parent=1 // pred_fallthru
      _
    // Predicated region
    $region38: #{lstm_model_forward.4} parent=1 // pred_check
      _
    $region39: #{lstm_model_forward.4} parent=1 // pred_check_branch
      %1540 = sbr.rel (0) target = $region41
    $region40: #{lstm_model_forward.4} parent=1 // pred_region
      _
    $region41: #{lstm_model_forward.4} parent=1 // pred_fallthru
      _
    // Predicated region
    $region42: #{lstm_model_forward.4} parent=1 // pred_check
      _
    $region43: #{lstm_model_forward.4} parent=1 // pred_check_branch
      %1542 = sbr.rel (0) target = $region45
    $region44: #{lstm_model_forward.4} parent=1 // pred_region
      %1543 = dma.done [#allocation5], 128
    $region45: #{lstm_model_forward.4} parent=1 // pred_fallthru
      _
    // Predicated region
    $region46: #{lstm_model_forward.4} parent=1 // pred_check
      _
    $region47: #{lstm_model_forward.4} parent=1 // pred_check_branch
      %1545 = sbr.rel (0) target = $region49
    $region48: #{lstm_model_forward.4} parent=1 // pred_region
      %1546 = dma.done [#allocation7], 128
    $region49: #{lstm_model_forward.4} parent=1 // pred_fallthru
      _
    %1547 = vsyncpa [#allocation5], 1
    %1548 = vsyncpa [#allocation7], 1

</llo_original>
